<compile_context>
chip_gen: v6e
topology: v6e:2x2x1
jax: 0.10.0
libtpu: 0.0.40
codegen_flags: <defaults>
</compile_context>

<pallas_src>
import jax
import jax.numpy as jnp
from jax.experimental import pallas as pl
from jax.experimental.pallas import tpu as pltpu

JOINER_DIM = 1024
_LANE = 128
_SUBLANE = 8


def _round_up(x, m):
    return ((x + m - 1) // m) * m


def _joiner_kernel(enc_ref, pred_ref, wt_ref, bias_ref, out_ref):
    # enc_ref : (1, TILE_T, D)           bf16  encoder frames for this tile
    # pred_ref: (1, U, D)                bf16  all predictor steps (this batch)
    # wt_ref  : (D, TILE_V)              bf16  transposed linear-weight tile
    # bias_ref: (1, TILE_V)              f32
    # out_ref : (1, TILE_T, U, TILE_V)   f32 (or bf16)
    enc = enc_ref[0]                                    # (TILE_T, D)
    pred = pred_ref[0]                                  # (U, D)
    tile_t, d = enc.shape
    u = pred.shape[0]

    # Broadcast add + relu on the VPU (bf16), feeding the MXU directly.
    x = jnp.maximum(enc[:, None, :] + pred[None, :, :], 0)   # (TILE_T, U, D)
    x = x.reshape(tile_t * u, d)

    # (TILE_T*U, D) @ (D, TILE_V) on the MXU with f32 accumulation.
    y = jnp.dot(x, wt_ref[...], preferred_element_type=jnp.float32)
    y = y + bias_ref[...]                               # (TILE_T*U, TILE_V) f32
    out_ref[0] = y.reshape(tile_t, u, -1).astype(out_ref.dtype)


def _choose_v_pad(V, max_tile_v):
    V_lane = _round_up(V, _LANE)
    return V_lane if V_lane <= max_tile_v else _round_up(V, max_tile_v)


def _joiner_forward(encoder_out, predictor_out, wt, bias2d, *, V,
                    target_rows, max_tile_v, out_dtype):
    B, T, D = encoder_out.shape
    Bp, U, Dp = predictor_out.shape
    assert B == Bp and D == Dp == JOINER_DIM
    D_w, V_pad = wt.shape
    assert D_w == D and bias2d.shape == (1, V_pad)

    # ---- tile selection -----------------------------------------------------
    # Encoder-frame tile: aim for ~target_rows MXU rows (tile_t * U), multiple
    # of 8 sublanes, never exceeding the (8-padded) sequence length.
    T_pad8 = _round_up(T, _SUBLANE)
    tile_t = _round_up(max(1, -(-target_rows // U)), _SUBLANE)
    tile_t = min(tile_t, T_pad8)
    T_pad = _round_up(T_pad8, tile_t)

    # Vocab tile: single resident tile when small; otherwise lane-dense
    # max_tile_v-column tiles.  Bound the f32 output tile (~<=4 MiB) so a large
    # U shrinks tile_v instead of blowing past v7x's 64 MiB VMEM.
    tile_v = V_pad if V_pad <= max_tile_v else max_tile_v
    while (tile_v > _LANE and V_pad % (tile_v // 2) == 0
           and tile_t * U * tile_v * 4 > 4 * 1024 * 1024):
        tile_v //= 2

    # ---- operand prep (activations only; weights already prepared once) -----
    enc = encoder_out.astype(jnp.bfloat16)
    pred = predictor_out.astype(jnp.bfloat16)
    if T_pad != T:
        enc = jnp.pad(enc, ((0, 0), (0, T_pad - T), (0, 0)))

    grid = (B, V_pad // tile_v, T_pad // tile_t)

    # ---- VMEM / cost bookkeeping (double-buffering counted exactly once) ----
    out_bytes = jnp.dtype(out_dtype).itemsize
    vmem_need = (2 * tile_t * D * 2                       # encoder tile (bf16)
                 + 2 * U * D * 2                          # predictor   (bf16)
                 + 2 * D * tile_v * 2                     # W^T tile    (bf16)
                 + 2 * tile_v * 4                         # bias tile
                 + 2 * tile_t * U * tile_v * out_bytes    # output tile
                 + tile_t * U * D * 2                     # x intermediate
                 + tile_t * U * tile_v * 4)               # y accumulator (f32)
    vmem_limit = int(min(max(int(1.5 * vmem_need), 32 * 1024 * 1024),
                         48 * 1024 * 1024))               # headroom under v7x 64 MiB

    cost = pl.CostEstimate(
        flops=2 * B * T_pad * U * D * V_pad,
        transcendentals=0,
        bytes_accessed=(B * T_pad * D * 2 + B * U * D * 2
                        + B * (V_pad // tile_v) * D * tile_v * 2 + V_pad * 4
                        + B * T_pad * U * V_pad * out_bytes),
    )

    out_full = pl.pallas_call(
        _joiner_kernel,
        out_shape=jax.ShapeDtypeStruct((B, T_pad, U, V_pad), out_dtype),
        grid_spec=pltpu.PrefetchScalarGridSpec(
            num_scalar_prefetch=0,
            grid=grid,
            in_specs=[
                # encoder tile: changes every inner step (small: tile_t*D bf16)
                pl.BlockSpec((1, tile_t, D), lambda b, v, t: (b, t, 0)),
                # predictor: constant over (v, t) -> DMA'd only B times
                pl.BlockSpec((1, U, D), lambda b, v, t: (b, 0, 0)),
                # W^T tile: constant over the innermost t axis -> stays resident
                pl.BlockSpec((D, tile_v), lambda b, v, t: (0, v)),
                pl.BlockSpec((1, tile_v), lambda b, v, t: (0, v)),
            ],
            out_specs=pl.BlockSpec((1, tile_t, U, tile_v),
                                   lambda b, v, t: (b, t, 0, v)),
        ),
        compiler_params=pltpu.CompilerParams(
            dimension_semantics=("parallel", "parallel", "parallel"),
            vmem_limit_bytes=vmem_limit,
        ),
        cost_estimate=cost,
    )(enc, pred, wt, bias2d)

    if T_pad != T or V_pad != V:
        out_full = out_full[:, :T, :, :V]
    return out_full


def make_joiner(weight, bias, *, target_rows=256, max_tile_v=1024,
                out_dtype=jnp.float32):
    """One-time parameter prep (W^T, pad, bf16 cast), returns a jitted
    forward(encoder_out [B,T,D], predictor_out [B,U,D]) -> [B,T,U,V]."""
    V, D = weight.shape
    assert D == JOINER_DIM and bias.shape == (V,)

    V_pad = _choose_v_pad(V, max_tile_v)
    wt = weight.T.astype(jnp.bfloat16)                  # (D, V) — MXU friendly
    bias_f32 = bias.astype(jnp.float32)
    if V_pad != V:
        wt = jnp.pad(wt, ((0, 0), (0, V_pad - V)))
        bias_f32 = jnp.pad(bias_f32, (0, V_pad - V))
    bias2d = bias_f32.reshape(1, V_pad)

    @jax.jit
    def fwd(encoder_out, predictor_out):
        return _joiner_forward(encoder_out, predictor_out, wt, bias2d, V=V,
                               target_rows=target_rows, max_tile_v=max_tile_v,
                               out_dtype=out_dtype)

    return fwd


if __name__ == "__main__":
    # Small, deterministic example shapes consistent with the module.
    B, T, U = 2, 8, 8
    D = JOINER_DIM          # fixed by the module (joiner_dim = 1024)
    V = 128                 # num_outputs

    key = jax.random.PRNGKey(0)
    k_enc, k_pred, k_w, k_b = jax.random.split(key, 4)

    encoder_out = jax.random.normal(k_enc, (B, T, D), dtype=jnp.float32)
    predictor_out = jax.random.normal(k_pred, (B, U, D), dtype=jnp.float32)

    # Deterministic "Linear" parameters (PyTorch conventions: W [V, D], b [V]).
    bound = 1.0 / (D ** 0.5)
    weight = jax.random.uniform(k_w, (V, D), minval=-bound, maxval=bound,
                                dtype=jnp.float32)
    bias = jax.random.uniform(k_b, (V,), minval=-bound, maxval=bound,
                              dtype=jnp.float32)

    joiner = make_joiner(weight, bias)
    out = jax.block_until_ready(joiner(encoder_out, predictor_out))

    # Pure-JAX f32 reference for correctness.
    ref = jnp.maximum(encoder_out[:, :, None, :] + predictor_out[:, None, :, :], 0.0)
    ref = jnp.einsum("btud,vd->btuv", ref, weight) + bias

    assert out.shape == (B, T, U, V)
    # bf16 activations + weights feeding the MXU (f32 accumulation) -> loose tol.
    max_err = float(jnp.max(jnp.abs(out - ref)))
    assert jnp.allclose(out, ref, atol=3e-2, rtol=3e-2), max_err

    print("KERNEL_OK")
</pallas_src>

<mosaic_0001>
module attributes {stable_mosaic.version = 11 : i64} {
  func.func @_joiner_kernel(%arg0: i32, %arg1: i32, %arg2: i32, %arg3: memref<1x8x1024xbf16, #tpu.memory_space<vmem>>, %arg4: memref<1x8x1024xbf16, #tpu.memory_space<vmem>>, %arg5: memref<1024x128xbf16, #tpu.memory_space<vmem>>, %arg6: memref<1x128xf32, #tpu.memory_space<vmem>>, %arg7: memref<1x8x8x128xf32, #tpu.memory_space<vmem>>) attributes {dimension_semantics = [#tpu.dimension_semantics<parallel>, #tpu.dimension_semantics<parallel>, #tpu.dimension_semantics<parallel>], iteration_bounds = array<i64: 2, 1, 1>, scalar_prefetch = 0 : i64, scratch_operands = 0 : i64, tpu.core_type = #tpu.core_type<tc>, window_params = [{transform_indices = @transform_0, window_bounds = array<i64: 1, 8, 1024>}, {transform_indices = @transform_1, window_bounds = array<i64: 1, 8, 1024>}, {transform_indices = @transform_2, window_bounds = array<i64: 1024, 128>}, {transform_indices = @transform_3, window_bounds = array<i64: 1, 128>}, {transform_indices = @transform_4, window_bounds = array<i64: 1, 8, 8, 128>}]} {
    %c0 = arith.constant 0 : index
    %c0_0 = arith.constant 0 : index
    %c0_1 = arith.constant 0 : index
    %0 = vector.load %arg3[%c0, %c0_0, %c0_1] : memref<1x8x1024xbf16, #tpu.memory_space<vmem>>, vector<1x8x1024xbf16>
    %1 = vector.shape_cast %0 : vector<1x8x1024xbf16> to vector<8x1024xbf16>
    %c0_2 = arith.constant 0 : index
    %c0_3 = arith.constant 0 : index
    %c0_4 = arith.constant 0 : index
    %2 = vector.load %arg4[%c0_2, %c0_3, %c0_4] : memref<1x8x1024xbf16, #tpu.memory_space<vmem>>, vector<1x8x1024xbf16>
    %3 = vector.shape_cast %2 : vector<1x8x1024xbf16> to vector<8x1024xbf16>
    %4 = vector.shape_cast %1 : vector<8x1024xbf16> to vector<8x1x1024xbf16>
    %5 = vector.shape_cast %3 : vector<8x1024xbf16> to vector<1x8x1024xbf16>
    %6 = vector.broadcast %4 : vector<8x1x1024xbf16> to vector<8x8x1024xbf16>
    %7 = vector.broadcast %5 : vector<1x8x1024xbf16> to vector<8x8x1024xbf16>
    %8 = arith.addf %6, %7 : vector<8x8x1024xbf16>
    %cst = arith.constant 0.000000e+00 : bf16
    %9 = vector.broadcast %cst : bf16 to vector<8x8x1024xbf16>
    %10 = arith.maximumf %8, %9 : vector<8x8x1024xbf16>
    %11 = vector.shape_cast %10 : vector<8x8x1024xbf16> to vector<64x1024xbf16>
    %c0_5 = arith.constant 0 : index
    %c0_6 = arith.constant 0 : index
    %12 = vector.load %arg5[%c0_5, %c0_6] : memref<1024x128xbf16, #tpu.memory_space<vmem>>, vector<1024x128xbf16>
    %cst_7 = arith.constant dense<0.000000e+00> : vector<64x128xf32>
    %13 = tpu.matmul %11, %12, %cst_7 {dimension_numbers = #tpu.dot_dimension_numbers<[1], [0], [0], [1], [0, 0, 1, 1], [], []>} : vector<64x1024xbf16>, vector<1024x128xbf16>, vector<64x128xf32> -> vector<64x128xf32>
    %c0_8 = arith.constant 0 : index
    %c0_9 = arith.constant 0 : index
    %14 = vector.load %arg6[%c0_8, %c0_9] : memref<1x128xf32, #tpu.memory_space<vmem>>, vector<1x128xf32>
    %15 = vector.broadcast %14 : vector<1x128xf32> to vector<64x128xf32>
    %16 = arith.addf %13, %15 : vector<64x128xf32>
    %17 = vector.shape_cast %16 : vector<64x128xf32> to vector<8x8x128xf32>
    %c0_10 = arith.constant 0 : index
    %c0_11 = arith.constant 0 : index
    %c0_12 = arith.constant 0 : index
    %c0_13 = arith.constant 0 : index
    %18 = vector.load %arg7[%c0_10, %c0_11, %c0_12, %c0_13] : memref<1x8x8x128xf32, #tpu.memory_space<vmem>>, vector<1x8x8x128xf32>
    %19 = vector.shape_cast %18 : vector<1x8x8x128xf32> to vector<8x8x128xf32>
    %20 = vector.shape_cast %17 : vector<8x8x128xf32> to vector<1x8x8x128xf32>
    tpu.vector_store %arg7[%c0_10, %c0_11, %c0_12, %c0_13], %20 {strides = array<i32>} : memref<1x8x8x128xf32, #tpu.memory_space<vmem>>, vector<1x8x8x128xf32>,
    return
  }
  func.func @transform_0(%arg0: i32, %arg1: i32, %arg2: i32) -> (i32, i32, i32) {
    %c0_i32 = arith.constant 0 : i32
    %c0_i32_0 = arith.constant 0 : i32
    return %arg0, %arg2, %c0_i32 : i32, i32, i32
  }
  func.func @transform_1(%arg0: i32, %arg1: i32, %arg2: i32) -> (i32, i32, i32) {
    %c0_i32 = arith.constant 0 : i32
    %c0_i32_0 = arith.constant 0 : i32
    %c0_i32_1 = arith.constant 0 : i32
    return %arg0, %c0_i32, %c0_i32_0 : i32, i32, i32
  }
  func.func @transform_2(%arg0: i32, %arg1: i32, %arg2: i32) -> (i32, i32) {
    %c0_i32 = arith.constant 0 : i32
    %c0_i32_0 = arith.constant 0 : i32
    return %c0_i32, %arg1 : i32, i32
  }
  func.func @transform_3(%arg0: i32, %arg1: i32, %arg2: i32) -> (i32, i32) {
    %c0_i32 = arith.constant 0 : i32
    %c0_i32_0 = arith.constant 0 : i32
    return %c0_i32, %arg1 : i32, i32
  }
  func.func @transform_4(%arg0: i32, %arg1: i32, %arg2: i32) -> (i32, i32, i32, i32) {
    %c0_i32 = arith.constant 0 : i32
    %c0_i32_0 = arith.constant 0 : i32
    return %arg0, %arg2, %c0_i32, %arg1 : i32, i32, i32, i32
  }
}

</mosaic_0001>

<llo_original>
// kernel: fwd.1
$region0: #{fwd.1}
  #allocation0 [shape = 'u32[]', space=smem, size = 0x4, offset = 0x4, fixed_abs, tag = 'smem constant byte address 0x4 - core index']
  #allocation1 [shape = 'u32[144,128]{1,0:T(1,128)}', space=vmem, size = 0x12000, scoped, tag = 'internal scratch']
  %s0 = inlined_call_operand.vmem [shape: bf16[2,8,1024], index: 0, kind: input, shape index: {}]
  %s1 = inlined_call_operand.vmem [shape: bf16[2,8,1024], index: 1, kind: input, shape index: {}]
  %s2 = inlined_call_operand.hbm [shape: bf16[1024,128], index: 2, kind: input, shape index: {}]
  %s3 = inlined_call_operand.vmem [shape: f32[1,128], index: 3, kind: input, shape index: {}]
  %s4 = inlined_call_operand.hbm [shape: f32[2,8,8,128], index: 4, kind: output, shape index: {}]
  %s5 = sld [smem:[#allocation0]]
  $region53: #{fwd.1} parent=0
    _
  %s7 = ssub.s32 1, %s5
  %s8 = scalar_select 0, %s7, %s5
  $region1: #{fwd.1} parent=0
    #allocation2 [shape = 'u8[262144]{0}', space=vmem, size = 0x40000, scoped, tag = 'input window, operand 2, single buffered']
    #allocation3 [shape = 's32[2]{0}', space=sflag, size = 0x8, scoped, tag = 'scoped memory for fwd.1']
    #allocation4 [shape = 's32[2]{0}', space=sflag, size = 0x8, scoped, tag = 'scoped memory for fwd.1']
    #allocation5 [shape = 'u8[65536]{0}', space=vmem, size = 0x10000, scoped, tag = 'output window, operand 0']
    %9 = vsyncpa [#allocation3], 0
    %10 = vsyncpa [#allocation4], 0
    %s11 = scalar_lea.sflag [#allocation4], 1
    %12 = vsyncpa %s11, 0
    loop: start=0, step=1, limit=4
    $region2: #{fwd.1} parent=1 // loop_pre_header
      _
    $region3: #{fwd.1} parent=1 // loop_header
      %s14 = sphi 0, %s18
      %p15 = scmp.ge.s32.totalorder %s14, 4
      %s21 = sphi 0, %s40
      %s22 = sphi 0, %s36
      %s23 = sphi 0, %s32
      %s24 = sphi 0, %s21
      %s25 = sphi 0, %s22
      %s26 = sphi 0, %s23
      %s27 = sphi 0, %s24
      %s28 = sphi 0, %s25
      %s29 = sphi 0, %s26
      %s45 = sphi 0, %s47
      %s48 = sphi 0, %s45
      %s49 = sphi 0, %s48
      %s65 = sphi 0, %s49
      %s71 = sphi 0, %s73
      %s74 = sphi 0, %s71
      %s75 = sphi 0, %s74
      %s91 = sphi 0, %s75
      %s97 = sphi 0, %s99
      %s100 = sphi 0, %s97
      %s101 = sphi 0, %s100
      %s117 = sphi 0, %s101
      %s123 = sphi 0, %s125
      %s126 = sphi 0, %s123
      %s127 = sphi 0, %s126
      %s143 = sphi 0, %s127
      %s153 = sphi 0, %s155
      %s156 = sphi 0, %s153
      %s157 = sphi 0, %s156
      %s173 = sphi 0, %s157
    $region4: #{fwd.1} parent=1 // loop_header_branch
      %17 = sbr.rel (%p15) target = $region8
    $region5: #{fwd.1} parent=1 // loop_body
      %s19 = ssub.s32 %s14, 1
      %s20 = ssub.s32 %s14, 2
      %s30 = sadd.s32 1, %s23
      %p31 = scmp.ge.s32.totalorder %s30, 1
      %s32 = scalar_select %p31, 0, %s30
      %s33 = sadd.s32 1, %s22
      %s34 = scalar_select %p31, %s33, %s22
      %p35 = scmp.ge.s32.totalorder %s34, 1
      %s36 = scalar_select %p35, 0, %s34
      %s37 = sadd.s32 1, %s21
      %s38 = scalar_select %p35, %s37, %s21
      %p39 = scmp.ge.s32.totalorder %s38, 2
      %s40 = scalar_select %p39, 0, %s38
      %s41 = ssub.s32 %s21, %s40
      %s42 = ssub.s32 %s23, %s32
      %s43 = sor.u32 %s41, %s42
      %p44 = scmp.eq.s32.totalorder %s43, 0
      %s46 = sadd.s32 %s45, 1
      %s47 = scalar_select %p44, %s45, %s46
      %p50 = pneg %p44
      %p51 = scmp.eq.s32.totalorder %s14, 1
      %p52 = por %p50, %p51
      %p53 = scmp.ne.s32.totalorder %s45, %s48
      %p54 = scmp.eq.s32.totalorder %s14, 0
      %p55 = por %p53, %p54
      %p56 = scmp.ne.s32.totalorder %s45, %s48
      %p57 = scmp.eq.s32.totalorder %s19, 1
      %p58 = por %p56, %p57
      %p59 = scmp.ne.s32.totalorder %s48, %s49
      %p60 = scmp.eq.s32.totalorder %s19, 0
      %p61 = por %p59, %p60
      %p62 = scmp.ne.s32.totalorder %s48, %s49
      %p63 = scmp.eq.s32.totalorder %s20, 1
      %p64 = por %p62, %p63
      %p66 = scmp.ne.s32.totalorder %s49, %s65
      %p67 = scmp.eq.s32.totalorder %s20, 0
      %p68 = por %p66, %p67
      %s69 = ssub.s32 %s21, %s40
      %p70 = scmp.eq.s32.totalorder %s69, 0
      %s72 = sadd.s32 %s71, 1
      %s73 = scalar_select %p70, %s71, %s72
      %p76 = pneg %p70
      %p77 = scmp.eq.s32.totalorder %s14, 1
      %p78 = por %p76, %p77
      %p79 = scmp.ne.s32.totalorder %s71, %s74
      %p80 = scmp.eq.s32.totalorder %s14, 0
      %p81 = por %p79, %p80
      %p82 = scmp.ne.s32.totalorder %s71, %s74
      %p83 = scmp.eq.s32.totalorder %s19, 1
      %p84 = por %p82, %p83
      %p85 = scmp.ne.s32.totalorder %s74, %s75
      %p86 = scmp.eq.s32.totalorder %s19, 0
      %p87 = por %p85, %p86
      %p88 = scmp.ne.s32.totalorder %s74, %s75
      %p89 = scmp.eq.s32.totalorder %s20, 1
      %p90 = por %p88, %p89
      %p92 = scmp.ne.s32.totalorder %s75, %s91
      %p93 = scmp.eq.s32.totalorder %s20, 0
      %p94 = por %p92, %p93
      %s95 = ssub.s32 %s22, %s36
      %p96 = scmp.eq.s32.totalorder %s95, 0
      %s98 = sadd.s32 %s97, 1
      %s99 = scalar_select %p96, %s97, %s98
      %p102 = pneg %p96
      %p103 = scmp.eq.s32.totalorder %s14, 1
      %p104 = por %p102, %p103
      %p105 = scmp.ne.s32.totalorder %s97, %s100
      %p106 = scmp.eq.s32.totalorder %s14, 0
      %p107 = por %p105, %p106
      %p108 = scmp.ne.s32.totalorder %s97, %s100
      %p109 = scmp.eq.s32.totalorder %s19, 1
      %p110 = por %p108, %p109
      %p111 = scmp.ne.s32.totalorder %s100, %s101
      %p112 = scmp.eq.s32.totalorder %s19, 0
      %p113 = por %p111, %p112
      %p114 = scmp.ne.s32.totalorder %s100, %s101
      %p115 = scmp.eq.s32.totalorder %s20, 1
      %p116 = por %p114, %p115
      %p118 = scmp.ne.s32.totalorder %s101, %s117
      %p119 = scmp.eq.s32.totalorder %s20, 0
      %p120 = por %p118, %p119
      %s121 = ssub.s32 %s22, %s36
      %p122 = scmp.eq.s32.totalorder %s121, 0
      %s124 = sadd.s32 %s123, 1
      %s125 = scalar_select %p122, %s123, %s124
      %p128 = pneg %p122
      %p129 = scmp.eq.s32.totalorder %s14, 1
      %p130 = por %p128, %p129
      %p131 = scmp.ne.s32.totalorder %s123, %s126
      %p132 = scmp.eq.s32.totalorder %s14, 0
      %p133 = por %p131, %p132
      %p134 = scmp.ne.s32.totalorder %s123, %s126
      %p135 = scmp.eq.s32.totalorder %s19, 1
      %p136 = por %p134, %p135
      %p137 = scmp.ne.s32.totalorder %s126, %s127
      %p138 = scmp.eq.s32.totalorder %s19, 0
      %p139 = por %p137, %p138
      %p140 = scmp.ne.s32.totalorder %s126, %s127
      %p141 = scmp.eq.s32.totalorder %s20, 1
      %p142 = por %p140, %p141
      %p144 = scmp.ne.s32.totalorder %s127, %s143
      %p145 = scmp.eq.s32.totalorder %s20, 0
      %p146 = por %p144, %p145
      %s147 = ssub.s32 %s21, %s40
      %s148 = ssub.s32 %s23, %s32
      %s149 = sor.u32 %s147, %s148
      %s150 = ssub.s32 %s22, %s36
      %s151 = sor.u32 %s149, %s150
      %p152 = scmp.eq.s32.totalorder %s151, 0
      %s154 = sadd.s32 %s153, 1
      %s155 = scalar_select %p152, %s153, %s154
      %p158 = pneg %p152
      %p159 = scmp.eq.s32.totalorder %s14, 1
      %p160 = por %p158, %p159
      %p161 = scmp.ne.s32.totalorder %s153, %s156
      %p162 = scmp.eq.s32.totalorder %s14, 0
      %p163 = por %p161, %p162
      %p164 = scmp.ne.s32.totalorder %s153, %s156
      %p165 = scmp.eq.s32.totalorder %s19, 1
      %p166 = por %p164, %p165
      %p167 = scmp.ne.s32.totalorder %s156, %s157
      %p168 = scmp.eq.s32.totalorder %s19, 0
      %p169 = por %p167, %p168
      %p170 = scmp.ne.s32.totalorder %s156, %s157
      %p171 = scmp.eq.s32.totalorder %s20, 1
      %p172 = por %p170, %p171
      %p174 = scmp.ne.s32.totalorder %s157, %s173
      %p175 = scmp.eq.s32.totalorder %s20, 0
      %p176 = por %p174, %p175
      %p177 = scmp.le.s32.totalorder 1, %s14
      %p178 = scmp.lt.s32.totalorder %s14, 3
      %p179 = pnand %p177, %p178
      %p180 = pneg %p179
      // Predicated region
      $region9: #{fwd.1} parent=5 // pred_check
        _
      $region10: #{fwd.1} parent=5 // pred_check_branch
        %182 = sbr.rel (%p179) target = $region12
      $region11: #{fwd.1} parent=5 // pred_region
        %s183 = ssub.s32 %s14, 1
        // Predicated region
        $region13: #{fwd.1} parent=11 // pred_check
          %p184 = pneg %p113
        $region14: #{fwd.1} parent=11 // pred_check_branch
          %186 = sbr.rel (%p184) target = $region16
        $region15: #{fwd.1} parent=11 // pred_region
          %s188 = ssub.s32 8192, 8192
          %189 = vsyncadd [#allocation3], %s188
          %s190 = smul.addr %s25, 64
          %s191 = scalar_lea.hbm %s2, %s190
          %s192 = sshll.u32 [#allocation2], 4
          %s193 = int_to_ptr.vmem [resolvable:$true] %s192
          %198 = dma.hbm_to_vmem [thread:$0]  %s191, 8192, %s193, [#allocation3], 64, 64, 4
        $region16: #{fwd.1} parent=11 // pred_fallthru
          _
        // Predicated region
        $region17: #{fwd.1} parent=11 // pred_check
          %p199 = pneg %p139
        $region18: #{fwd.1} parent=11 // pred_check_branch
          %201 = sbr.rel (%p199) target = $region20
        $region19: #{fwd.1} parent=11 // pred_region
          %p202 = scmp.lt.s32.totalorder %s25, 0
          %s203 = scalar_select %p202, %s25, 0
          %s204 = scalar_lea.vmem %s3, %s203
        $region20: #{fwd.1} parent=11 // pred_fallthru
          _
      $region12: #{fwd.1} parent=5 // pred_fallthru
        _
      %p205 = scmp.lt.s32.totalorder %s14, 2
      // Predicated region
      $region21: #{fwd.1} parent=5 // pred_check
        %p206 = pneg %p205
      $region22: #{fwd.1} parent=5 // pred_check_branch
        %208 = sbr.rel (%p206) target = $region24
      $region23: #{fwd.1} parent=5 // pred_region
        // Predicated region
        $region25: #{fwd.1} parent=23 // pred_check
          %p209 = pneg %p55
        $region26: #{fwd.1} parent=23 // pred_check_branch
          %211 = sbr.rel (%p209) target = $region28
        $region27: #{fwd.1} parent=23 // pred_region
          %p212 = scmp.lt.s32.totalorder %s21, 1
          %s213 = scalar_select %p212, %s21, 1
          %p214 = scmp.lt.s32.totalorder %s23, 0
          %s215 = scalar_select %p214, %s23, 0
          %s216 = smul.addr %s215, 8
          %s217 = smul.addr %s213, 8
          %s218 = sadd.s32 %s216, %s217
          %s219 = smul.addr %s218, 4
          %s220 = scalar_lea.vmem %s0, %s219
        $region28: #{fwd.1} parent=23 // pred_fallthru
          _
        // Predicated region
        $region29: #{fwd.1} parent=23 // pred_check
          %p221 = pneg %p81
        $region30: #{fwd.1} parent=23 // pred_check_branch
          %223 = sbr.rel (%p221) target = $region32
        $region31: #{fwd.1} parent=23 // pred_region
          %p224 = scmp.lt.s32.totalorder %s21, 1
          %s225 = scalar_select %p224, %s21, 1
          %s226 = smul.addr %s225, 8
          %s227 = smul.addr %s226, 4
          %s228 = scalar_lea.vmem %s1, %s227
        $region32: #{fwd.1} parent=23 // pred_fallthru
          _
      $region24: #{fwd.1} parent=5 // pred_fallthru
        _
      %p229 = scmp.le.s32.totalorder 1, %s14
      %p230 = scmp.lt.s32.totalorder %s14, 3
      %p231 = pnand %p229, %p230
      %p232 = pneg %p231
      // Predicated region
      $region33: #{fwd.1} parent=5 // pred_check
        _
      $region34: #{fwd.1} parent=5 // pred_check_branch
        %234 = sbr.rel (%p231) target = $region36
      $region35: #{fwd.1} parent=5 // pred_region
        %s235 = ssub.s32 %s14, 1
        // Predicated region
        $region37: #{fwd.1} parent=35 // pred_check
          %p236 = pneg %p113
        $region38: #{fwd.1} parent=35 // pred_check_branch
          %238 = sbr.rel (%p236) target = $region40
        $region39: #{fwd.1} parent=35 // pred_region
          %239 = dma.done [#allocation3], 8192
        $region40: #{fwd.1} parent=35 // pred_fallthru
          _
        %p240 = scmp.lt.s32.totalorder %s24, 1
        %s241 = scalar_select %p240, %s24, 1
        %p242 = scmp.lt.s32.totalorder %s26, 0
        %s243 = scalar_select %p242, %s26, 0
        %s244 = smul.addr %s243, 8
        %s245 = smul.addr %s241, 8
        %s246 = sadd.s32 %s244, %s245
        %s247 = smul.addr %s246, 4
        %s248 = scalar_lea.vmem %s0, %s247
        %p249 = pneg %p61
        %p250 = pneg %p58
        %p251 = scmp.lt.s32.totalorder %s24, 1
        %s252 = scalar_select %p251, %s24, 1
        %s253 = smul.addr %s252, 8
        %s254 = smul.addr %s253, 4
        %s255 = scalar_lea.vmem %s1, %s254
        %p256 = pneg %p87
        %p257 = pneg %p84
        %p258 = pneg %p113
        %p259 = pneg %p110
        %p260 = scmp.lt.s32.totalorder %s25, 0
        %s261 = scalar_select %p260, %s25, 0
        %s262 = scalar_lea.vmem %s3, %s261
        %p263 = pneg %p139
        %p264 = pneg %p136
        %p265 = pneg %p169
        %p266 = pneg %p166
        %s267 = sand.u32 %s156, 1
        %s268 = scalar_lea.sflag [#allocation4], %s267
        %s269 = sand.u32 %s156, 1
        %s270 = smul.addr %s269, 64
        %s271 = scalar_lea.vmem [#allocation5], %s270
        %p272 = scmp.lt.s32.totalorder %s24, 1
        %s273 = scalar_select %p272, %s24, 1
        %p274 = scmp.lt.s32.totalorder %s26, 0
        %s275 = scalar_select %p274, %s26, 0
        %s276 = smul.addr %s275, 8
        %s277 = smul.addr %s273, 8
        %s278 = sadd.s32 %s276, %s277
        %s279 = smul.addr %s278, 4
        %s280 = scalar_lea.vmem %s0, %s279
        %p281 = scmp.lt.s32.totalorder %s24, 1
        %s282 = scalar_select %p281, %s24, 1
        %s283 = smul.addr %s282, 8
        %s284 = smul.addr %s283, 4
        %s285 = scalar_lea.vmem %s1, %s284
        %p286 = scmp.lt.s32.totalorder %s25, 0
        %s287 = scalar_select %p286, %s25, 0
        %s288 = scalar_lea.vmem %s3, %s287
        %s289 = smul.u32 8, %s26
        %v291 = vld [vmem:[%s280] sm:$0xff]
        %v292 = vld [vmem:[%s280 + $0x8] sm:$0xff]
        %v293 = vld [vmem:[%s280 + $0x10] sm:$0xff]
        %v294 = vld [vmem:[%s280 + $0x18] sm:$0xff]
        %v295 = vld [vmem:[%s285] sm:$0xff]
        %v296 = vld [vmem:[%s285 + $0x8] sm:$0xff]
        %v297 = vld [vmem:[%s285 + $0x10] sm:$0xff]
        %v298 = vld [vmem:[%s285 + $0x18] sm:$0xff]
        %v304 = vunpack.c.l.s4 1966171168
        %v305 = vunpack.c.0.s8 %v304
        %v306 = vlaneseq
        %v307 = vshrl.u32 %v306, 7
        %v308 = vsub.s32 %v305, %v307
        %v309 = vrot.slane %v291, %v308
        %v311 = vunpack.c.l.s4 1966171168
        %v312 = vunpack.c.0.s8 %v311
        %v313 = vlaneseq
        %v314 = vshrl.u32 %v313, 7
        %v315 = vsub.s32 %v312, %v314
        %v316 = vrot.slane %v292, %v315
        %v318 = vunpack.c.l.s4 1966171168
        %v319 = vunpack.c.0.s8 %v318
        %v320 = vlaneseq
        %v321 = vshrl.u32 %v320, 7
        %v322 = vsub.s32 %v319, %v321
        %v323 = vrot.slane %v293, %v322
        %v325 = vunpack.c.l.s4 1966171168
        %v326 = vunpack.c.0.s8 %v325
        %v327 = vlaneseq
        %v328 = vshrl.u32 %v327, 7
        %v329 = vsub.s32 %v326, %v328
        %v330 = vrot.slane %v294, %v329
        %v331 = vcombine.low %v309, %v316
        %v332 = vcombine.high %v309, %v316
        %v333 = vcombine.low %v323, %v330
        %v334 = vcombine.high %v323, %v330
        %v336 = vunpack.c.l.s4 1966171168
        %v337 = vunpack.c.0.s8 %v336
        %v338 = vlaneseq
        %v339 = vshrl.u32 %v338, 7
        %v340 = vsub.s32 %v337, %v339
        %v341 = vrot.slane %v331, %v340
        %v343 = vunpack.c.l.s4 1966171168
        %v344 = vunpack.c.0.s8 %v343
        %v345 = vlaneseq
        %v346 = vshrl.u32 %v345, 7
        %v347 = vsub.s32 %v344, %v346
        %v348 = vrot.slane %v332, %v347
        %v350 = vunpack.c.l.s4 1966171168
        %v351 = vunpack.c.0.s8 %v350
        %v352 = vlaneseq
        %v353 = vshrl.u32 %v352, 7
        %v354 = vsub.s32 %v351, %v353
        %v355 = vrot.slane %v333, %v354
        %v357 = vunpack.c.l.s4 1966171168
        %v358 = vunpack.c.0.s8 %v357
        %v359 = vlaneseq
        %v360 = vshrl.u32 %v359, 7
        %v361 = vsub.s32 %v358, %v360
        %v362 = vrot.slane %v334, %v361
        %v363 = vcombine.low %v341, %v355
        %v364 = vcombine.high %v341, %v355
        %v365 = vcombine.low %v348, %v362
        %v366 = vcombine.high %v348, %v362
        %v367 = vunpack.i.l.s16 %v363
        %v368 = vunpack.i.h.s16 %v363
        %v369 = vunpack.i.l.s16 %v365
        %v370 = vunpack.i.h.s16 %v365
        %v371 = vunpack.i.l.s16 %v364
        %v372 = vunpack.i.h.s16 %v364
        %v373 = vunpack.i.l.s16 %v366
        %v374 = vunpack.i.h.s16 %v366
        %v375 = vpack.i.b16 %v367, %v367
        %v376 = vpack.i.b16 %v368, %v368
        %v377 = vpack.i.b16 %v369, %v369
        %v378 = vpack.i.b16 %v370, %v370
        %v379 = vpack.i.b16 %v371, %v371
        %v380 = vpack.i.b16 %v372, %v372
        %v381 = vpack.i.b16 %v373, %v373
        %v382 = vpack.i.b16 %v374, %v374
        %v383 = vlaneseq
        %v384 = vshrl.u32 %v383, 7
        %v385 = vsub.s32 0, %v384
        %v386 = vrot.slane %v375, %v385
        %v387 = vlaneseq
        %v388 = vshrl.u32 %v387, 7
        %v389 = vsub.s32 1, %v388
        %v390 = vrot.slane %v375, %v389
        %v391 = vlaneseq
        %v392 = vshrl.u32 %v391, 7
        %v393 = vsub.s32 2, %v392
        %v394 = vrot.slane %v375, %v393
        %v395 = vlaneseq
        %v396 = vshrl.u32 %v395, 7
        %v397 = vsub.s32 3, %v396
        %v398 = vrot.slane %v375, %v397
        %v399 = vlaneseq
        %v400 = vshrl.u32 %v399, 7
        %v401 = vsub.s32 4, %v400
        %v402 = vrot.slane %v375, %v401
        %v403 = vlaneseq
        %v404 = vshrl.u32 %v403, 7
        %v405 = vsub.s32 5, %v404
        %v406 = vrot.slane %v375, %v405
        %v407 = vlaneseq
        %v408 = vshrl.u32 %v407, 7
        %v409 = vsub.s32 6, %v408
        %v410 = vrot.slane %v375, %v409
        %v411 = vlaneseq
        %v412 = vshrl.u32 %v411, 7
        %v413 = vsub.s32 7, %v412
        %v414 = vrot.slane %v375, %v413
        %v415 = vlaneseq
        %v416 = vshrl.u32 %v415, 7
        %v417 = vsub.s32 0, %v416
        %v418 = vrot.slane %v376, %v417
        %v419 = vlaneseq
        %v420 = vshrl.u32 %v419, 7
        %v421 = vsub.s32 1, %v420
        %v422 = vrot.slane %v376, %v421
        %v423 = vlaneseq
        %v424 = vshrl.u32 %v423, 7
        %v425 = vsub.s32 2, %v424
        %v426 = vrot.slane %v376, %v425
        %v427 = vlaneseq
        %v428 = vshrl.u32 %v427, 7
        %v429 = vsub.s32 3, %v428
        %v430 = vrot.slane %v376, %v429
        %v431 = vlaneseq
        %v432 = vshrl.u32 %v431, 7
        %v433 = vsub.s32 4, %v432
        %v434 = vrot.slane %v376, %v433
        %v435 = vlaneseq
        %v436 = vshrl.u32 %v435, 7
        %v437 = vsub.s32 5, %v436
        %v438 = vrot.slane %v376, %v437
        %v439 = vlaneseq
        %v440 = vshrl.u32 %v439, 7
        %v441 = vsub.s32 6, %v440
        %v442 = vrot.slane %v376, %v441
        %v443 = vlaneseq
        %v444 = vshrl.u32 %v443, 7
        %v445 = vsub.s32 7, %v444
        %v446 = vrot.slane %v376, %v445
        %v447 = vlaneseq
        %v448 = vshrl.u32 %v447, 7
        %v449 = vsub.s32 0, %v448
        %v450 = vrot.slane %v377, %v449
        %v451 = vlaneseq
        %v452 = vshrl.u32 %v451, 7
        %v453 = vsub.s32 1, %v452
        %v454 = vrot.slane %v377, %v453
        %v455 = vlaneseq
        %v456 = vshrl.u32 %v455, 7
        %v457 = vsub.s32 2, %v456
        %v458 = vrot.slane %v377, %v457
        %v459 = vlaneseq
        %v460 = vshrl.u32 %v459, 7
        %v461 = vsub.s32 3, %v460
        %v462 = vrot.slane %v377, %v461
        %v463 = vlaneseq
        %v464 = vshrl.u32 %v463, 7
        %v465 = vsub.s32 4, %v464
        %v466 = vrot.slane %v377, %v465
        %v467 = vlaneseq
        %v468 = vshrl.u32 %v467, 7
        %v469 = vsub.s32 5, %v468
        %v470 = vrot.slane %v377, %v469
        %v471 = vlaneseq
        %v472 = vshrl.u32 %v471, 7
        %v473 = vsub.s32 6, %v472
        %v474 = vrot.slane %v377, %v473
        %v475 = vlaneseq
        %v476 = vshrl.u32 %v475, 7
        %v477 = vsub.s32 7, %v476
        %v478 = vrot.slane %v377, %v477
        %v479 = vlaneseq
        %v480 = vshrl.u32 %v479, 7
        %v481 = vsub.s32 0, %v480
        %v482 = vrot.slane %v378, %v481
        %v483 = vlaneseq
        %v484 = vshrl.u32 %v483, 7
        %v485 = vsub.s32 1, %v484
        %v486 = vrot.slane %v378, %v485
        %v487 = vlaneseq
        %v488 = vshrl.u32 %v487, 7
        %v489 = vsub.s32 2, %v488
        %v490 = vrot.slane %v378, %v489
        %v491 = vlaneseq
        %v492 = vshrl.u32 %v491, 7
        %v493 = vsub.s32 3, %v492
        %v494 = vrot.slane %v378, %v493
        %v495 = vlaneseq
        %v496 = vshrl.u32 %v495, 7
        %v497 = vsub.s32 4, %v496
        %v498 = vrot.slane %v378, %v497
        %v499 = vlaneseq
        %v500 = vshrl.u32 %v499, 7
        %v501 = vsub.s32 5, %v500
        %v502 = vrot.slane %v378, %v501
        %v503 = vlaneseq
        %v504 = vshrl.u32 %v503, 7
        %v505 = vsub.s32 6, %v504
        %v506 = vrot.slane %v378, %v505
        %v507 = vlaneseq
        %v508 = vshrl.u32 %v507, 7
        %v509 = vsub.s32 7, %v508
        %v510 = vrot.slane %v378, %v509
        %v511 = vlaneseq
        %v512 = vshrl.u32 %v511, 7
        %v513 = vsub.s32 0, %v512
        %v514 = vrot.slane %v379, %v513
        %v515 = vlaneseq
        %v516 = vshrl.u32 %v515, 7
        %v517 = vsub.s32 1, %v516
        %v518 = vrot.slane %v379, %v517
        %v519 = vlaneseq
        %v520 = vshrl.u32 %v519, 7
        %v521 = vsub.s32 2, %v520
        %v522 = vrot.slane %v379, %v521
        %v523 = vlaneseq
        %v524 = vshrl.u32 %v523, 7
        %v525 = vsub.s32 3, %v524
        %v526 = vrot.slane %v379, %v525
        %v527 = vlaneseq
        %v528 = vshrl.u32 %v527, 7
        %v529 = vsub.s32 4, %v528
        %v530 = vrot.slane %v379, %v529
        %v531 = vlaneseq
        %v532 = vshrl.u32 %v531, 7
        %v533 = vsub.s32 5, %v532
        %v534 = vrot.slane %v379, %v533
        %v535 = vlaneseq
        %v536 = vshrl.u32 %v535, 7
        %v537 = vsub.s32 6, %v536
        %v538 = vrot.slane %v379, %v537
        %v539 = vlaneseq
        %v540 = vshrl.u32 %v539, 7
        %v541 = vsub.s32 7, %v540
        %v542 = vrot.slane %v379, %v541
        %v543 = vlaneseq
        %v544 = vshrl.u32 %v543, 7
        %v545 = vsub.s32 0, %v544
        %v546 = vrot.slane %v380, %v545
        %v547 = vlaneseq
        %v548 = vshrl.u32 %v547, 7
        %v549 = vsub.s32 1, %v548
        %v550 = vrot.slane %v380, %v549
        %v551 = vlaneseq
        %v552 = vshrl.u32 %v551, 7
        %v553 = vsub.s32 2, %v552
        %v554 = vrot.slane %v380, %v553
        %v555 = vlaneseq
        %v556 = vshrl.u32 %v555, 7
        %v557 = vsub.s32 3, %v556
        %v558 = vrot.slane %v380, %v557
        %v559 = vlaneseq
        %v560 = vshrl.u32 %v559, 7
        %v561 = vsub.s32 4, %v560
        %v562 = vrot.slane %v380, %v561
        %v563 = vlaneseq
        %v564 = vshrl.u32 %v563, 7
        %v565 = vsub.s32 5, %v564
        %v566 = vrot.slane %v380, %v565
        %v567 = vlaneseq
        %v568 = vshrl.u32 %v567, 7
        %v569 = vsub.s32 6, %v568
        %v570 = vrot.slane %v380, %v569
        %v571 = vlaneseq
        %v572 = vshrl.u32 %v571, 7
        %v573 = vsub.s32 7, %v572
        %v574 = vrot.slane %v380, %v573
        %v575 = vlaneseq
        %v576 = vshrl.u32 %v575, 7
        %v577 = vsub.s32 0, %v576
        %v578 = vrot.slane %v381, %v577
        %v579 = vlaneseq
        %v580 = vshrl.u32 %v579, 7
        %v581 = vsub.s32 1, %v580
        %v582 = vrot.slane %v381, %v581
        %v583 = vlaneseq
        %v584 = vshrl.u32 %v583, 7
        %v585 = vsub.s32 2, %v584
        %v586 = vrot.slane %v381, %v585
        %v587 = vlaneseq
        %v588 = vshrl.u32 %v587, 7
        %v589 = vsub.s32 3, %v588
        %v590 = vrot.slane %v381, %v589
        %v591 = vlaneseq
        %v592 = vshrl.u32 %v591, 7
        %v593 = vsub.s32 4, %v592
        %v594 = vrot.slane %v381, %v593
        %v595 = vlaneseq
        %v596 = vshrl.u32 %v595, 7
        %v597 = vsub.s32 5, %v596
        %v598 = vrot.slane %v381, %v597
        %v599 = vlaneseq
        %v600 = vshrl.u32 %v599, 7
        %v601 = vsub.s32 6, %v600
        %v602 = vrot.slane %v381, %v601
        %v603 = vlaneseq
        %v604 = vshrl.u32 %v603, 7
        %v605 = vsub.s32 7, %v604
        %v606 = vrot.slane %v381, %v605
        %v607 = vlaneseq
        %v608 = vshrl.u32 %v607, 7
        %v609 = vsub.s32 0, %v608
        %v610 = vrot.slane %v382, %v609
        %v611 = vlaneseq
        %v612 = vshrl.u32 %v611, 7
        %v613 = vsub.s32 1, %v612
        %v614 = vrot.slane %v382, %v613
        %v615 = vlaneseq
        %v616 = vshrl.u32 %v615, 7
        %v617 = vsub.s32 2, %v616
        %v618 = vrot.slane %v382, %v617
        %v619 = vlaneseq
        %v620 = vshrl.u32 %v619, 7
        %v621 = vsub.s32 3, %v620
        %v622 = vrot.slane %v382, %v621
        %v623 = vlaneseq
        %v624 = vshrl.u32 %v623, 7
        %v625 = vsub.s32 4, %v624
        %v626 = vrot.slane %v382, %v625
        %v627 = vlaneseq
        %v628 = vshrl.u32 %v627, 7
        %v629 = vsub.s32 5, %v628
        %v630 = vrot.slane %v382, %v629
        %v631 = vlaneseq
        %v632 = vshrl.u32 %v631, 7
        %v633 = vsub.s32 6, %v632
        %v634 = vrot.slane %v382, %v633
        %v635 = vlaneseq
        %v636 = vshrl.u32 %v635, 7
        %v637 = vsub.s32 7, %v636
        %v638 = vrot.slane %v382, %v637
        %v640 = vpack.i.b16 %v386, %v386
        %v642 = vlaneseq
        %v643 = vshrl.u32 %v642, 7
        %v644 = vsub.s32 0, %v643
        %v645 = vrot.slane %v640, %v644
        %v647 = vpack.i.b16 %v390, %v390
        %v649 = vlaneseq
        %v650 = vshrl.u32 %v649, 7
        %v651 = vsub.s32 0, %v650
        %v652 = vrot.slane %v647, %v651
        %v654 = vpack.i.b16 %v394, %v394
        %v656 = vlaneseq
        %v657 = vshrl.u32 %v656, 7
        %v658 = vsub.s32 0, %v657
        %v659 = vrot.slane %v654, %v658
        %v661 = vpack.i.b16 %v398, %v398
        %v663 = vlaneseq
        %v664 = vshrl.u32 %v663, 7
        %v665 = vsub.s32 0, %v664
        %v666 = vrot.slane %v661, %v665
        %v668 = vpack.i.b16 %v402, %v402
        %v670 = vlaneseq
        %v671 = vshrl.u32 %v670, 7
        %v672 = vsub.s32 0, %v671
        %v673 = vrot.slane %v668, %v672
        %v675 = vpack.i.b16 %v406, %v406
        %v677 = vlaneseq
        %v678 = vshrl.u32 %v677, 7
        %v679 = vsub.s32 0, %v678
        %v680 = vrot.slane %v675, %v679
        %v682 = vpack.i.b16 %v410, %v410
        %v684 = vlaneseq
        %v685 = vshrl.u32 %v684, 7
        %v686 = vsub.s32 0, %v685
        %v687 = vrot.slane %v682, %v686
        %v689 = vpack.i.b16 %v414, %v414
        %v691 = vlaneseq
        %v692 = vshrl.u32 %v691, 7
        %v693 = vsub.s32 0, %v692
        %v694 = vrot.slane %v689, %v693
        %v696 = vpack.i.b16 %v418, %v418
        %v698 = vlaneseq
        %v699 = vshrl.u32 %v698, 7
        %v700 = vsub.s32 0, %v699
        %v701 = vrot.slane %v696, %v700
        %v703 = vpack.i.b16 %v422, %v422
        %v705 = vlaneseq
        %v706 = vshrl.u32 %v705, 7
        %v707 = vsub.s32 0, %v706
        %v708 = vrot.slane %v703, %v707
        %v710 = vpack.i.b16 %v426, %v426
        %v712 = vlaneseq
        %v713 = vshrl.u32 %v712, 7
        %v714 = vsub.s32 0, %v713
        %v715 = vrot.slane %v710, %v714
        %v717 = vpack.i.b16 %v430, %v430
        %v719 = vlaneseq
        %v720 = vshrl.u32 %v719, 7
        %v721 = vsub.s32 0, %v720
        %v722 = vrot.slane %v717, %v721
        %v724 = vpack.i.b16 %v434, %v434
        %v726 = vlaneseq
        %v727 = vshrl.u32 %v726, 7
        %v728 = vsub.s32 0, %v727
        %v729 = vrot.slane %v724, %v728
        %v731 = vpack.i.b16 %v438, %v438
        %v733 = vlaneseq
        %v734 = vshrl.u32 %v733, 7
        %v735 = vsub.s32 0, %v734
        %v736 = vrot.slane %v731, %v735
        %v738 = vpack.i.b16 %v442, %v442
        %v740 = vlaneseq
        %v741 = vshrl.u32 %v740, 7
        %v742 = vsub.s32 0, %v741
        %v743 = vrot.slane %v738, %v742
        %v745 = vpack.i.b16 %v446, %v446
        %v747 = vlaneseq
        %v748 = vshrl.u32 %v747, 7
        %v749 = vsub.s32 0, %v748
        %v750 = vrot.slane %v745, %v749
        %v752 = vpack.i.b16 %v450, %v450
        %v754 = vlaneseq
        %v755 = vshrl.u32 %v754, 7
        %v756 = vsub.s32 0, %v755
        %v757 = vrot.slane %v752, %v756
        %v759 = vpack.i.b16 %v454, %v454
        %v761 = vlaneseq
        %v762 = vshrl.u32 %v761, 7
        %v763 = vsub.s32 0, %v762
        %v764 = vrot.slane %v759, %v763
        %v766 = vpack.i.b16 %v458, %v458
        %v768 = vlaneseq
        %v769 = vshrl.u32 %v768, 7
        %v770 = vsub.s32 0, %v769
        %v771 = vrot.slane %v766, %v770
        %v773 = vpack.i.b16 %v462, %v462
        %v775 = vlaneseq
        %v776 = vshrl.u32 %v775, 7
        %v777 = vsub.s32 0, %v776
        %v778 = vrot.slane %v773, %v777
        %v780 = vpack.i.b16 %v466, %v466
        %v782 = vlaneseq
        %v783 = vshrl.u32 %v782, 7
        %v784 = vsub.s32 0, %v783
        %v785 = vrot.slane %v780, %v784
        %v787 = vpack.i.b16 %v470, %v470
        %v789 = vlaneseq
        %v790 = vshrl.u32 %v789, 7
        %v791 = vsub.s32 0, %v790
        %v792 = vrot.slane %v787, %v791
        %v794 = vpack.i.b16 %v474, %v474
        %v796 = vlaneseq
        %v797 = vshrl.u32 %v796, 7
        %v798 = vsub.s32 0, %v797
        %v799 = vrot.slane %v794, %v798
        %v801 = vpack.i.b16 %v478, %v478
        %v803 = vlaneseq
        %v804 = vshrl.u32 %v803, 7
        %v805 = vsub.s32 0, %v804
        %v806 = vrot.slane %v801, %v805
        %v808 = vpack.i.b16 %v482, %v482
        %v810 = vlaneseq
        %v811 = vshrl.u32 %v810, 7
        %v812 = vsub.s32 0, %v811
        %v813 = vrot.slane %v808, %v812
        %v815 = vpack.i.b16 %v486, %v486
        %v817 = vlaneseq
        %v818 = vshrl.u32 %v817, 7
        %v819 = vsub.s32 0, %v818
        %v820 = vrot.slane %v815, %v819
        %v822 = vpack.i.b16 %v490, %v490
        %v824 = vlaneseq
        %v825 = vshrl.u32 %v824, 7
        %v826 = vsub.s32 0, %v825
        %v827 = vrot.slane %v822, %v826
        %v829 = vpack.i.b16 %v494, %v494
        %v831 = vlaneseq
        %v832 = vshrl.u32 %v831, 7
        %v833 = vsub.s32 0, %v832
        %v834 = vrot.slane %v829, %v833
        %v836 = vpack.i.b16 %v498, %v498
        %v838 = vlaneseq
        %v839 = vshrl.u32 %v838, 7
        %v840 = vsub.s32 0, %v839
        %v841 = vrot.slane %v836, %v840
        %v843 = vpack.i.b16 %v502, %v502
        %v845 = vlaneseq
        %v846 = vshrl.u32 %v845, 7
        %v847 = vsub.s32 0, %v846
        %v848 = vrot.slane %v843, %v847
        %v850 = vpack.i.b16 %v506, %v506
        %v852 = vlaneseq
        %v853 = vshrl.u32 %v852, 7
        %v854 = vsub.s32 0, %v853
        %v855 = vrot.slane %v850, %v854
        %v857 = vpack.i.b16 %v510, %v510
        %v859 = vlaneseq
        %v860 = vshrl.u32 %v859, 7
        %v861 = vsub.s32 0, %v860
        %v862 = vrot.slane %v857, %v861
        %v864 = vpack.i.b16 %v514, %v514
        %v866 = vlaneseq
        %v867 = vshrl.u32 %v866, 7
        %v868 = vsub.s32 0, %v867
        %v869 = vrot.slane %v864, %v868
        %v871 = vpack.i.b16 %v518, %v518
        %v873 = vlaneseq
        %v874 = vshrl.u32 %v873, 7
        %v875 = vsub.s32 0, %v874
        %v876 = vrot.slane %v871, %v875
        %v878 = vpack.i.b16 %v522, %v522
        %v880 = vlaneseq
        %v881 = vshrl.u32 %v880, 7
        %v882 = vsub.s32 0, %v881
        %v883 = vrot.slane %v878, %v882
        %v885 = vpack.i.b16 %v526, %v526
        %v887 = vlaneseq
        %v888 = vshrl.u32 %v887, 7
        %v889 = vsub.s32 0, %v888
        %v890 = vrot.slane %v885, %v889
        %v892 = vpack.i.b16 %v530, %v530
        %v894 = vlaneseq
        %v895 = vshrl.u32 %v894, 7
        %v896 = vsub.s32 0, %v895
        %v897 = vrot.slane %v892, %v896
        %v899 = vpack.i.b16 %v534, %v534
        %v901 = vlaneseq
        %v902 = vshrl.u32 %v901, 7
        %v903 = vsub.s32 0, %v902
        %v904 = vrot.slane %v899, %v903
        %v906 = vpack.i.b16 %v538, %v538
        %v908 = vlaneseq
        %v909 = vshrl.u32 %v908, 7
        %v910 = vsub.s32 0, %v909
        %v911 = vrot.slane %v906, %v910
        %v913 = vpack.i.b16 %v542, %v542
        %v915 = vlaneseq
        %v916 = vshrl.u32 %v915, 7
        %v917 = vsub.s32 0, %v916
        %v918 = vrot.slane %v913, %v917
        %v920 = vpack.i.b16 %v546, %v546
        %v922 = vlaneseq
        %v923 = vshrl.u32 %v922, 7
        %v924 = vsub.s32 0, %v923
        %v925 = vrot.slane %v920, %v924
        %v927 = vpack.i.b16 %v550, %v550
        %v929 = vlaneseq
        %v930 = vshrl.u32 %v929, 7
        %v931 = vsub.s32 0, %v930
        %v932 = vrot.slane %v927, %v931
        %v934 = vpack.i.b16 %v554, %v554
        %v936 = vlaneseq
        %v937 = vshrl.u32 %v936, 7
        %v938 = vsub.s32 0, %v937
        %v939 = vrot.slane %v934, %v938
        %v941 = vpack.i.b16 %v558, %v558
        %v943 = vlaneseq
        %v944 = vshrl.u32 %v943, 7
        %v945 = vsub.s32 0, %v944
        %v946 = vrot.slane %v941, %v945
        %v948 = vpack.i.b16 %v562, %v562
        %v950 = vlaneseq
        %v951 = vshrl.u32 %v950, 7
        %v952 = vsub.s32 0, %v951
        %v953 = vrot.slane %v948, %v952
        %v955 = vpack.i.b16 %v566, %v566
        %v957 = vlaneseq
        %v958 = vshrl.u32 %v957, 7
        %v959 = vsub.s32 0, %v958
        %v960 = vrot.slane %v955, %v959
        %v962 = vpack.i.b16 %v570, %v570
        %v964 = vlaneseq
        %v965 = vshrl.u32 %v964, 7
        %v966 = vsub.s32 0, %v965
        %v967 = vrot.slane %v962, %v966
        %v969 = vpack.i.b16 %v574, %v574
        %v971 = vlaneseq
        %v972 = vshrl.u32 %v971, 7
        %v973 = vsub.s32 0, %v972
        %v974 = vrot.slane %v969, %v973
        %v976 = vpack.i.b16 %v578, %v578
        %v978 = vlaneseq
        %v979 = vshrl.u32 %v978, 7
        %v980 = vsub.s32 0, %v979
        %v981 = vrot.slane %v976, %v980
        %v983 = vpack.i.b16 %v582, %v582
        %v985 = vlaneseq
        %v986 = vshrl.u32 %v985, 7
        %v987 = vsub.s32 0, %v986
        %v988 = vrot.slane %v983, %v987
        %v990 = vpack.i.b16 %v586, %v586
        %v992 = vlaneseq
        %v993 = vshrl.u32 %v992, 7
        %v994 = vsub.s32 0, %v993
        %v995 = vrot.slane %v990, %v994
        %v997 = vpack.i.b16 %v590, %v590
        %v999 = vlaneseq
        %v1000 = vshrl.u32 %v999, 7
        %v1001 = vsub.s32 0, %v1000
        %v1002 = vrot.slane %v997, %v1001
        %v1004 = vpack.i.b16 %v594, %v594
        %v1006 = vlaneseq
        %v1007 = vshrl.u32 %v1006, 7
        %v1008 = vsub.s32 0, %v1007
        %v1009 = vrot.slane %v1004, %v1008
        %v1011 = vpack.i.b16 %v598, %v598
        %v1013 = vlaneseq
        %v1014 = vshrl.u32 %v1013, 7
        %v1015 = vsub.s32 0, %v1014
        %v1016 = vrot.slane %v1011, %v1015
        %v1018 = vpack.i.b16 %v602, %v602
        %v1020 = vlaneseq
        %v1021 = vshrl.u32 %v1020, 7
        %v1022 = vsub.s32 0, %v1021
        %v1023 = vrot.slane %v1018, %v1022
        %v1025 = vpack.i.b16 %v606, %v606
        %v1027 = vlaneseq
        %v1028 = vshrl.u32 %v1027, 7
        %v1029 = vsub.s32 0, %v1028
        %v1030 = vrot.slane %v1025, %v1029
        %v1032 = vpack.i.b16 %v610, %v610
        %v1034 = vlaneseq
        %v1035 = vshrl.u32 %v1034, 7
        %v1036 = vsub.s32 0, %v1035
        %v1037 = vrot.slane %v1032, %v1036
        %v1039 = vpack.i.b16 %v614, %v614
        %v1041 = vlaneseq
        %v1042 = vshrl.u32 %v1041, 7
        %v1043 = vsub.s32 0, %v1042
        %v1044 = vrot.slane %v1039, %v1043
        %v1046 = vpack.i.b16 %v618, %v618
        %v1048 = vlaneseq
        %v1049 = vshrl.u32 %v1048, 7
        %v1050 = vsub.s32 0, %v1049
        %v1051 = vrot.slane %v1046, %v1050
        %v1053 = vpack.i.b16 %v622, %v622
        %v1055 = vlaneseq
        %v1056 = vshrl.u32 %v1055, 7
        %v1057 = vsub.s32 0, %v1056
        %v1058 = vrot.slane %v1053, %v1057
        %v1060 = vpack.i.b16 %v626, %v626
        %v1062 = vlaneseq
        %v1063 = vshrl.u32 %v1062, 7
        %v1064 = vsub.s32 0, %v1063
        %v1065 = vrot.slane %v1060, %v1064
        %v1067 = vpack.i.b16 %v630, %v630
        %v1069 = vlaneseq
        %v1070 = vshrl.u32 %v1069, 7
        %v1071 = vsub.s32 0, %v1070
        %v1072 = vrot.slane %v1067, %v1071
        %v1074 = vpack.i.b16 %v634, %v634
        %v1076 = vlaneseq
        %v1077 = vshrl.u32 %v1076, 7
        %v1078 = vsub.s32 0, %v1077
        %v1079 = vrot.slane %v1074, %v1078
        %v1081 = vpack.i.b16 %v638, %v638
        %v1083 = vlaneseq
        %v1084 = vshrl.u32 %v1083, 7
        %v1085 = vsub.s32 0, %v1084
        %v1086 = vrot.slane %v1081, %v1085
        %v1091 = vunpack.c.l.b16 %v295
        %v1092 = vunpack.c.h.b16 %v295
        %v1093 = vunpack.c.l.b16 %v296
        %v1094 = vunpack.c.h.b16 %v296
        %v1095 = vunpack.c.l.b16 %v297
        %v1096 = vunpack.c.h.b16 %v297
        %v1097 = vunpack.c.l.b16 %v298
        %v1098 = vunpack.c.h.b16 %v298
        %v1099 = vpack.c.b16 %v1091, %v1091
        %v1100 = vpack.c.b16 %v1092, %v1092
        %v1101 = vpack.c.b16 %v1093, %v1093
        %v1102 = vpack.c.b16 %v1094, %v1094
        %v1103 = vpack.c.b16 %v1095, %v1095
        %v1104 = vpack.c.b16 %v1096, %v1096
        %v1105 = vpack.c.b16 %v1097, %v1097
        %v1106 = vpack.c.b16 %v1098, %v1098
        %v1115 = vadd.bf16 %v645, %v1099
        %v1116 = vadd.bf16 %v652, %v1100
        %v1117 = vadd.bf16 %v659, %v1101
        %v1118 = vadd.bf16 %v666, %v1102
        %v1119 = vadd.bf16 %v673, %v1103
        %v1120 = vadd.bf16 %v680, %v1104
        %v1121 = vadd.bf16 %v687, %v1105
        %v1122 = vadd.bf16 %v694, %v1106
        %v1123 = vadd.bf16 %v701, %v1099
        %v1124 = vadd.bf16 %v708, %v1100
        %v1125 = vadd.bf16 %v715, %v1101
        %v1126 = vadd.bf16 %v722, %v1102
        %v1127 = vadd.bf16 %v729, %v1103
        %v1128 = vadd.bf16 %v736, %v1104
        %v1129 = vadd.bf16 %v743, %v1105
        %v1130 = vadd.bf16 %v750, %v1106
        %v1131 = vadd.bf16 %v757, %v1099
        %v1132 = vadd.bf16 %v764, %v1100
        %v1133 = vadd.bf16 %v771, %v1101
        %v1134 = vadd.bf16 %v778, %v1102
        %v1135 = vadd.bf16 %v785, %v1103
        %v1136 = vadd.bf16 %v792, %v1104
        %v1137 = vadd.bf16 %v799, %v1105
        %v1138 = vadd.bf16 %v806, %v1106
        %v1139 = vadd.bf16 %v813, %v1099
        %v1140 = vadd.bf16 %v820, %v1100
        %v1141 = vadd.bf16 %v827, %v1101
        %v1142 = vadd.bf16 %v834, %v1102
        %v1143 = vadd.bf16 %v841, %v1103
        %v1144 = vadd.bf16 %v848, %v1104
        %v1145 = vadd.bf16 %v855, %v1105
        %v1146 = vadd.bf16 %v862, %v1106
        %v1147 = vadd.bf16 %v869, %v1099
        %v1148 = vadd.bf16 %v876, %v1100
        %v1149 = vadd.bf16 %v883, %v1101
        %v1150 = vadd.bf16 %v890, %v1102
        %v1151 = vadd.bf16 %v897, %v1103
        %v1152 = vadd.bf16 %v904, %v1104
        %v1153 = vadd.bf16 %v911, %v1105
        %v1154 = vadd.bf16 %v918, %v1106
        %v1155 = vadd.bf16 %v925, %v1099
        %v1156 = vadd.bf16 %v932, %v1100
        %v1157 = vadd.bf16 %v939, %v1101
        %v1158 = vadd.bf16 %v946, %v1102
        %v1159 = vadd.bf16 %v953, %v1103
        %v1160 = vadd.bf16 %v960, %v1104
        %v1161 = vadd.bf16 %v967, %v1105
        %v1162 = vadd.bf16 %v974, %v1106
        %v1163 = vadd.bf16 %v981, %v1099
        %v1164 = vadd.bf16 %v988, %v1100
        %v1165 = vadd.bf16 %v995, %v1101
        %v1166 = vadd.bf16 %v1002, %v1102
        %v1167 = vadd.bf16 %v1009, %v1103
        %v1168 = vadd.bf16 %v1016, %v1104
        %v1169 = vadd.bf16 %v1023, %v1105
        %v1170 = vadd.bf16 %v1030, %v1106
        %v1171 = vadd.bf16 %v1037, %v1099
        %v1172 = vadd.bf16 %v1044, %v1100
        %v1173 = vadd.bf16 %v1051, %v1101
        %v1174 = vadd.bf16 %v1058, %v1102
        %v1175 = vadd.bf16 %v1065, %v1103
        %v1176 = vadd.bf16 %v1072, %v1104
        %v1177 = vadd.bf16 %v1079, %v1105
        %v1178 = vadd.bf16 %v1086, %v1106
        %v1179 = vmax.bf16 %v1115, 0
        %v1180 = vmax.bf16 %v1116, 0
        %v1181 = vmax.bf16 %v1117, 0
        %v1182 = vmax.bf16 %v1118, 0
        %v1183 = vmax.bf16 %v1119, 0
        %v1184 = vmax.bf16 %v1120, 0
        %v1185 = vmax.bf16 %v1121, 0
        %v1186 = vmax.bf16 %v1122, 0
        %v1187 = vmax.bf16 %v1123, 0
        %v1188 = vmax.bf16 %v1124, 0
        %v1189 = vmax.bf16 %v1125, 0
        %v1190 = vmax.bf16 %v1126, 0
        %v1191 = vmax.bf16 %v1127, 0
        %v1192 = vmax.bf16 %v1128, 0
        %v1193 = vmax.bf16 %v1129, 0
        %v1194 = vmax.bf16 %v1130, 0
        %v1195 = vmax.bf16 %v1131, 0
        %v1196 = vmax.bf16 %v1132, 0
        %v1197 = vmax.bf16 %v1133, 0
        %v1198 = vmax.bf16 %v1134, 0
        %v1199 = vmax.bf16 %v1135, 0
        %v1200 = vmax.bf16 %v1136, 0
        %v1201 = vmax.bf16 %v1137, 0
        %v1202 = vmax.bf16 %v1138, 0
        %v1203 = vmax.bf16 %v1139, 0
        %v1204 = vmax.bf16 %v1140, 0
        %v1205 = vmax.bf16 %v1141, 0
        %v1206 = vmax.bf16 %v1142, 0
        %v1207 = vmax.bf16 %v1143, 0
        %v1208 = vmax.bf16 %v1144, 0
        %v1209 = vmax.bf16 %v1145, 0
        %v1210 = vmax.bf16 %v1146, 0
        %v1211 = vmax.bf16 %v1147, 0
        %v1212 = vmax.bf16 %v1148, 0
        %v1213 = vmax.bf16 %v1149, 0
        %v1214 = vmax.bf16 %v1150, 0
        %v1215 = vmax.bf16 %v1151, 0
        %v1216 = vmax.bf16 %v1152, 0
        %v1217 = vmax.bf16 %v1153, 0
        %v1218 = vmax.bf16 %v1154, 0
        %v1219 = vmax.bf16 %v1155, 0
        %v1220 = vmax.bf16 %v1156, 0
        %v1221 = vmax.bf16 %v1157, 0
        %v1222 = vmax.bf16 %v1158, 0
        %v1223 = vmax.bf16 %v1159, 0
        %v1224 = vmax.bf16 %v1160, 0
        %v1225 = vmax.bf16 %v1161, 0
        %v1226 = vmax.bf16 %v1162, 0
        %v1227 = vmax.bf16 %v1163, 0
        %v1228 = vmax.bf16 %v1164, 0
        %v1229 = vmax.bf16 %v1165, 0
        %v1230 = vmax.bf16 %v1166, 0
        %v1231 = vmax.bf16 %v1167, 0
        %v1232 = vmax.bf16 %v1168, 0
        %v1233 = vmax.bf16 %v1169, 0
        %v1234 = vmax.bf16 %v1170, 0
        %v1235 = vmax.bf16 %v1171, 0
        %v1236 = vmax.bf16 %v1172, 0
        %v1237 = vmax.bf16 %v1173, 0
        %v1238 = vmax.bf16 %v1174, 0
        %v1239 = vmax.bf16 %v1175, 0
        %v1240 = vmax.bf16 %v1176, 0
        %v1241 = vmax.bf16 %v1177, 0
        %v1242 = vmax.bf16 %v1178, 0
        %v1307 = vunpack.c.l.b16 %v1179
        %v1308 = vunpack.c.l.b16 %v1180
        %v1309 = vunpack.c.l.b16 %v1181
        %v1310 = vunpack.c.l.b16 %v1182
        %v1311 = vunpack.c.l.b16 %v1183
        %v1312 = vunpack.c.l.b16 %v1184
        %v1313 = vunpack.c.l.b16 %v1185
        %v1314 = vunpack.c.l.b16 %v1186
        %v1315 = vunpack.c.l.b16 %v1187
        %v1316 = vunpack.c.l.b16 %v1188
        %v1317 = vunpack.c.l.b16 %v1189
        %v1318 = vunpack.c.l.b16 %v1190
        %v1319 = vunpack.c.l.b16 %v1191
        %v1320 = vunpack.c.l.b16 %v1192
        %v1321 = vunpack.c.l.b16 %v1193
        %v1322 = vunpack.c.l.b16 %v1194
        %v1323 = vunpack.c.l.b16 %v1195
        %v1324 = vunpack.c.l.b16 %v1196
        %v1325 = vunpack.c.l.b16 %v1197
        %v1326 = vunpack.c.l.b16 %v1198
        %v1327 = vunpack.c.l.b16 %v1199
        %v1328 = vunpack.c.l.b16 %v1200
        %v1329 = vunpack.c.l.b16 %v1201
        %v1330 = vunpack.c.l.b16 %v1202
        %v1331 = vunpack.c.l.b16 %v1203
        %v1332 = vunpack.c.l.b16 %v1204
        %v1333 = vunpack.c.l.b16 %v1205
        %v1334 = vunpack.c.l.b16 %v1206
        %v1335 = vunpack.c.l.b16 %v1207
        %v1336 = vunpack.c.l.b16 %v1208
        %v1337 = vunpack.c.l.b16 %v1209
        %v1338 = vunpack.c.l.b16 %v1210
        %v1339 = vunpack.c.l.b16 %v1211
        %v1340 = vunpack.c.l.b16 %v1212
        %v1341 = vunpack.c.l.b16 %v1213
        %v1342 = vunpack.c.l.b16 %v1214
        %v1343 = vunpack.c.l.b16 %v1215
        %v1344 = vunpack.c.l.b16 %v1216
        %v1345 = vunpack.c.l.b16 %v1217
        %v1346 = vunpack.c.l.b16 %v1218
        %v1347 = vunpack.c.l.b16 %v1219
        %v1348 = vunpack.c.l.b16 %v1220
        %v1349 = vunpack.c.l.b16 %v1221
        %v1350 = vunpack.c.l.b16 %v1222
        %v1351 = vunpack.c.l.b16 %v1223
        %v1352 = vunpack.c.l.b16 %v1224
        %v1353 = vunpack.c.l.b16 %v1225
        %v1354 = vunpack.c.l.b16 %v1226
        %v1355 = vunpack.c.l.b16 %v1227
        %v1356 = vunpack.c.l.b16 %v1228
        %v1357 = vunpack.c.l.b16 %v1229
        %v1358 = vunpack.c.l.b16 %v1230
        %v1359 = vunpack.c.l.b16 %v1231
        %v1360 = vunpack.c.l.b16 %v1232
        %v1361 = vunpack.c.l.b16 %v1233
        %v1362 = vunpack.c.l.b16 %v1234
        %v1363 = vunpack.c.l.b16 %v1235
        %v1364 = vunpack.c.l.b16 %v1236
        %v1365 = vunpack.c.l.b16 %v1237
        %v1366 = vunpack.c.l.b16 %v1238
        %v1367 = vunpack.c.l.b16 %v1239
        %v1368 = vunpack.c.l.b16 %v1240
        %v1369 = vunpack.c.l.b16 %v1241
        %v1370 = vunpack.c.l.b16 %v1242
        %v1371 = vld [vmem:[#allocation2] sm:$0xf]
        %v1372 = vld [vmem:[#allocation2 + $0x4] sm:$0xf]
        %v1373 = vld [vmem:[#allocation2 + $0x8] sm:$0xf]
        %v1374 = vld [vmem:[#allocation2 + $0xc] sm:$0xf]
        %v1375 = vld [vmem:[#allocation2 + $0x10] sm:$0xf]
        %v1376 = vld [vmem:[#allocation2 + $0x14] sm:$0xf]
        %v1377 = vld [vmem:[#allocation2 + $0x18] sm:$0xf]
        %v1378 = vld [vmem:[#allocation2 + $0x1c] sm:$0xf]
        %v1379 = vld [vmem:[#allocation2 + $0x20] sm:$0xf]
        %v1380 = vld [vmem:[#allocation2 + $0x24] sm:$0xf]
        %v1381 = vld [vmem:[#allocation2 + $0x28] sm:$0xf]
        %v1382 = vld [vmem:[#allocation2 + $0x2c] sm:$0xf]
        %v1383 = vld [vmem:[#allocation2 + $0x30] sm:$0xf]
        %v1384 = vld [vmem:[#allocation2 + $0x34] sm:$0xf]
        %v1385 = vld [vmem:[#allocation2 + $0x38] sm:$0xf]
        %v1386 = vld [vmem:[#allocation2 + $0x3c] sm:$0xf]
        %v1387 = vld [vmem:[#allocation2 + $0x40] sm:$0xf]
        %v1388 = vld [vmem:[#allocation2 + $0x44] sm:$0xf]
        %v1389 = vld [vmem:[#allocation2 + $0x48] sm:$0xf]
        %v1390 = vld [vmem:[#allocation2 + $0x4c] sm:$0xf]
        %v1391 = vld [vmem:[#allocation2 + $0x50] sm:$0xf]
        %v1392 = vld [vmem:[#allocation2 + $0x54] sm:$0xf]
        %v1393 = vld [vmem:[#allocation2 + $0x58] sm:$0xf]
        %v1394 = vld [vmem:[#allocation2 + $0x5c] sm:$0xf]
        %v1395 = vld [vmem:[#allocation2 + $0x60] sm:$0xf]
        %v1396 = vld [vmem:[#allocation2 + $0x64] sm:$0xf]
        %v1397 = vld [vmem:[#allocation2 + $0x68] sm:$0xf]
        %v1398 = vld [vmem:[#allocation2 + $0x6c] sm:$0xf]
        %v1399 = vld [vmem:[#allocation2 + $0x70] sm:$0xf]
        %v1400 = vld [vmem:[#allocation2 + $0x74] sm:$0xf]
        %v1401 = vld [vmem:[#allocation2 + $0x78] sm:$0xf]
        %v1402 = vld [vmem:[#allocation2 + $0x7c] sm:$0xf]
        %v1403 = vld [vmem:[#allocation2 + $0x80] sm:$0xf]
        %v1404 = vld [vmem:[#allocation2 + $0x84] sm:$0xf]
        %v1405 = vld [vmem:[#allocation2 + $0x88] sm:$0xf]
        %v1406 = vld [vmem:[#allocation2 + $0x8c] sm:$0xf]
        %v1407 = vld [vmem:[#allocation2 + $0x90] sm:$0xf]
        %v1408 = vld [vmem:[#allocation2 + $0x94] sm:$0xf]
        %v1409 = vld [vmem:[#allocation2 + $0x98] sm:$0xf]
        %v1410 = vld [vmem:[#allocation2 + $0x9c] sm:$0xf]
        %v1411 = vld [vmem:[#allocation2 + $0xa0] sm:$0xf]
        %v1412 = vld [vmem:[#allocation2 + $0xa4] sm:$0xf]
        %v1413 = vld [vmem:[#allocation2 + $0xa8] sm:$0xf]
        %v1414 = vld [vmem:[#allocation2 + $0xac] sm:$0xf]
        %v1415 = vld [vmem:[#allocation2 + $0xb0] sm:$0xf]
        %v1416 = vld [vmem:[#allocation2 + $0xb4] sm:$0xf]
        %v1417 = vld [vmem:[#allocation2 + $0xb8] sm:$0xf]
        %v1418 = vld [vmem:[#allocation2 + $0xbc] sm:$0xf]
        %v1419 = vld [vmem:[#allocation2 + $0xc0] sm:$0xf]
        %v1420 = vld [vmem:[#allocation2 + $0xc4] sm:$0xf]
        %v1421 = vld [vmem:[#allocation2 + $0xc8] sm:$0xf]
        %v1422 = vld [vmem:[#allocation2 + $0xcc] sm:$0xf]
        %v1423 = vld [vmem:[#allocation2 + $0xd0] sm:$0xf]
        %v1424 = vld [vmem:[#allocation2 + $0xd4] sm:$0xf]
        %v1425 = vld [vmem:[#allocation2 + $0xd8] sm:$0xf]
        %v1426 = vld [vmem:[#allocation2 + $0xdc] sm:$0xf]
        %v1427 = vld [vmem:[#allocation2 + $0xe0] sm:$0xf]
        %v1428 = vld [vmem:[#allocation2 + $0xe4] sm:$0xf]
        %v1429 = vld [vmem:[#allocation2 + $0xe8] sm:$0xf]
        %v1430 = vld [vmem:[#allocation2 + $0xec] sm:$0xf]
        %v1431 = vld [vmem:[#allocation2 + $0xf0] sm:$0xf]
        %v1432 = vld [vmem:[#allocation2 + $0xf4] sm:$0xf]
        %v1433 = vld [vmem:[#allocation2 + $0xf8] sm:$0xf]
        %v1434 = vld [vmem:[#allocation2 + $0xfc] sm:$0xf]
        %v1435 = vld [vmem:[#allocation2 + $0x100] sm:$0xf]
        %v1436 = vld [vmem:[#allocation2 + $0x104] sm:$0xf]
        %v1437 = vld [vmem:[#allocation2 + $0x108] sm:$0xf]
        %v1438 = vld [vmem:[#allocation2 + $0x10c] sm:$0xf]
        %v1439 = vld [vmem:[#allocation2 + $0x110] sm:$0xf]
        %v1440 = vld [vmem:[#allocation2 + $0x114] sm:$0xf]
        %v1441 = vld [vmem:[#allocation2 + $0x118] sm:$0xf]
        %v1442 = vld [vmem:[#allocation2 + $0x11c] sm:$0xf]
        %v1443 = vld [vmem:[#allocation2 + $0x120] sm:$0xf]
        %v1444 = vld [vmem:[#allocation2 + $0x124] sm:$0xf]
        %v1445 = vld [vmem:[#allocation2 + $0x128] sm:$0xf]
        %v1446 = vld [vmem:[#allocation2 + $0x12c] sm:$0xf]
        %v1447 = vld [vmem:[#allocation2 + $0x130] sm:$0xf]
        %v1448 = vld [vmem:[#allocation2 + $0x134] sm:$0xf]
        %v1449 = vld [vmem:[#allocation2 + $0x138] sm:$0xf]
        %v1450 = vld [vmem:[#allocation2 + $0x13c] sm:$0xf]
        %v1451 = vld [vmem:[#allocation2 + $0x140] sm:$0xf]
        %v1452 = vld [vmem:[#allocation2 + $0x144] sm:$0xf]
        %v1453 = vld [vmem:[#allocation2 + $0x148] sm:$0xf]
        %v1454 = vld [vmem:[#allocation2 + $0x14c] sm:$0xf]
        %v1455 = vld [vmem:[#allocation2 + $0x150] sm:$0xf]
        %v1456 = vld [vmem:[#allocation2 + $0x154] sm:$0xf]
        %v1457 = vld [vmem:[#allocation2 + $0x158] sm:$0xf]
        %v1458 = vld [vmem:[#allocation2 + $0x15c] sm:$0xf]
        %v1459 = vld [vmem:[#allocation2 + $0x160] sm:$0xf]
        %v1460 = vld [vmem:[#allocation2 + $0x164] sm:$0xf]
        %v1461 = vld [vmem:[#allocation2 + $0x168] sm:$0xf]
        %v1462 = vld [vmem:[#allocation2 + $0x16c] sm:$0xf]
        %v1463 = vld [vmem:[#allocation2 + $0x170] sm:$0xf]
        %v1464 = vld [vmem:[#allocation2 + $0x174] sm:$0xf]
        %v1465 = vld [vmem:[#allocation2 + $0x178] sm:$0xf]
        %v1466 = vld [vmem:[#allocation2 + $0x17c] sm:$0xf]
        %v1467 = vld [vmem:[#allocation2 + $0x180] sm:$0xf]
        %v1468 = vld [vmem:[#allocation2 + $0x184] sm:$0xf]
        %v1469 = vld [vmem:[#allocation2 + $0x188] sm:$0xf]
        %v1470 = vld [vmem:[#allocation2 + $0x18c] sm:$0xf]
        %v1471 = vld [vmem:[#allocation2 + $0x190] sm:$0xf]
        %v1472 = vld [vmem:[#allocation2 + $0x194] sm:$0xf]
        %v1473 = vld [vmem:[#allocation2 + $0x198] sm:$0xf]
        %v1474 = vld [vmem:[#allocation2 + $0x19c] sm:$0xf]
        %v1475 = vld [vmem:[#allocation2 + $0x1a0] sm:$0xf]
        %v1476 = vld [vmem:[#allocation2 + $0x1a4] sm:$0xf]
        %v1477 = vld [vmem:[#allocation2 + $0x1a8] sm:$0xf]
        %v1478 = vld [vmem:[#allocation2 + $0x1ac] sm:$0xf]
        %v1479 = vld [vmem:[#allocation2 + $0x1b0] sm:$0xf]
        %v1480 = vld [vmem:[#allocation2 + $0x1b4] sm:$0xf]
        %v1481 = vld [vmem:[#allocation2 + $0x1b8] sm:$0xf]
        %v1482 = vld [vmem:[#allocation2 + $0x1bc] sm:$0xf]
        %v1483 = vld [vmem:[#allocation2 + $0x1c0] sm:$0xf]
        %v1484 = vld [vmem:[#allocation2 + $0x1c4] sm:$0xf]
        %v1485 = vld [vmem:[#allocation2 + $0x1c8] sm:$0xf]
        %v1486 = vld [vmem:[#allocation2 + $0x1cc] sm:$0xf]
        %v1487 = vld [vmem:[#allocation2 + $0x1d0] sm:$0xf]
        %v1488 = vld [vmem:[#allocation2 + $0x1d4] sm:$0xf]
        %v1489 = vld [vmem:[#allocation2 + $0x1d8] sm:$0xf]
        %v1490 = vld [vmem:[#allocation2 + $0x1dc] sm:$0xf]
        %v1491 = vld [vmem:[#allocation2 + $0x1e0] sm:$0xf]
        %v1492 = vld [vmem:[#allocation2 + $0x1e4] sm:$0xf]
        %v1493 = vld [vmem:[#allocation2 + $0x1e8] sm:$0xf]
        %v1494 = vld [vmem:[#allocation2 + $0x1ec] sm:$0xf]
        %v1495 = vld [vmem:[#allocation2 + $0x1f0] sm:$0xf]
        %v1496 = vld [vmem:[#allocation2 + $0x1f4] sm:$0xf]
        %v1497 = vld [vmem:[#allocation2 + $0x1f8] sm:$0xf]
        %v1498 = vld [vmem:[#allocation2 + $0x1fc] sm:$0xf]
        %v1499 = vld [vmem:[%s288] sm:$0x1]
        %v1501 = vlaneseq
        %v1502 = vshrl.u32 %v1501, 7
        %v1503 = vsub.s32 0, %v1502
        %v1504 = vrot.slane %v1499, %v1503
        %v1506 = vpack.c.b16 %v1315, %v1307
        %v1507 = vpack.c.b16 %v1316, %v1308
        %v1508 = vpack.c.b16 %v1317, %v1309
        %v1509 = vpack.c.b16 %v1318, %v1310
        %v1510 = vpack.c.b16 %v1319, %v1311
        %v1511 = vpack.c.b16 %v1320, %v1312
        %v1512 = vpack.c.b16 %v1321, %v1313
        %v1513 = vpack.c.b16 %v1322, %v1314
        %v1514 = vpack.c.b16 %v1331, %v1323
        %v1515 = vpack.c.b16 %v1332, %v1324
        %v1516 = vpack.c.b16 %v1333, %v1325
        %v1517 = vpack.c.b16 %v1334, %v1326
        %v1518 = vpack.c.b16 %v1335, %v1327
        %v1519 = vpack.c.b16 %v1336, %v1328
        %v1520 = vpack.c.b16 %v1337, %v1329
        %v1521 = vpack.c.b16 %v1338, %v1330
        %v1522 = vpack.c.b16 %v1347, %v1339
        %v1523 = vpack.c.b16 %v1348, %v1340
        %v1524 = vpack.c.b16 %v1349, %v1341
        %v1525 = vpack.c.b16 %v1350, %v1342
        %v1526 = vpack.c.b16 %v1351, %v1343
        %v1527 = vpack.c.b16 %v1352, %v1344
        %v1528 = vpack.c.b16 %v1353, %v1345
        %v1529 = vpack.c.b16 %v1354, %v1346
        %v1530 = vpack.c.b16 %v1363, %v1355
        %v1531 = vpack.c.b16 %v1364, %v1356
        %v1532 = vpack.c.b16 %v1365, %v1357
        %v1533 = vpack.c.b16 %v1366, %v1358
        %v1534 = vpack.c.b16 %v1367, %v1359
        %v1535 = vpack.c.b16 %v1368, %v1360
        %v1536 = vpack.c.b16 %v1369, %v1361
        %v1537 = vpack.c.b16 %v1370, %v1362
        %v1698 = vunpack.c.l.b16 %v1371
        %v1699 = vunpack.c.l.b16 %v1372
        %v1700 = vunpack.c.l.b16 %v1373
        %v1701 = vunpack.c.l.b16 %v1374
        %v1702 = vunpack.c.l.b16 %v1375
        %v1703 = vunpack.c.l.b16 %v1376
        %v1704 = vunpack.c.l.b16 %v1377
        %v1705 = vunpack.c.l.b16 %v1378
        %v1706 = vunpack.c.l.b16 %v1379
        %v1707 = vunpack.c.l.b16 %v1380
        %v1708 = vunpack.c.l.b16 %v1381
        %v1709 = vunpack.c.l.b16 %v1382
        %v1710 = vunpack.c.l.b16 %v1383
        %v1711 = vunpack.c.l.b16 %v1384
        %v1712 = vunpack.c.l.b16 %v1385
        %v1713 = vunpack.c.l.b16 %v1386
        %v1714 = vunpack.c.l.b16 %v1387
        %v1715 = vunpack.c.l.b16 %v1388
        %v1716 = vunpack.c.l.b16 %v1389
        %v1717 = vunpack.c.l.b16 %v1390
        %v1718 = vunpack.c.l.b16 %v1391
        %v1719 = vunpack.c.l.b16 %v1392
        %v1720 = vunpack.c.l.b16 %v1393
        %v1721 = vunpack.c.l.b16 %v1394
        %v1722 = vunpack.c.l.b16 %v1395
        %v1723 = vunpack.c.l.b16 %v1396
        %v1724 = vunpack.c.l.b16 %v1397
        %v1725 = vunpack.c.l.b16 %v1398
        %v1726 = vunpack.c.l.b16 %v1399
        %v1727 = vunpack.c.l.b16 %v1400
        %v1728 = vunpack.c.l.b16 %v1401
        %v1729 = vunpack.c.l.b16 %v1402
        %v1730 = vunpack.c.l.b16 %v1403
        %v1731 = vunpack.c.l.b16 %v1404
        %v1732 = vunpack.c.l.b16 %v1405
        %v1733 = vunpack.c.l.b16 %v1406
        %v1734 = vunpack.c.l.b16 %v1407
        %v1735 = vunpack.c.l.b16 %v1408
        %v1736 = vunpack.c.l.b16 %v1409
        %v1737 = vunpack.c.l.b16 %v1410
        %v1738 = vunpack.c.l.b16 %v1411
        %v1739 = vunpack.c.l.b16 %v1412
        %v1740 = vunpack.c.l.b16 %v1413
        %v1741 = vunpack.c.l.b16 %v1414
        %v1742 = vunpack.c.l.b16 %v1415
        %v1743 = vunpack.c.l.b16 %v1416
        %v1744 = vunpack.c.l.b16 %v1417
        %v1745 = vunpack.c.l.b16 %v1418
        %v1746 = vunpack.c.l.b16 %v1419
        %v1747 = vunpack.c.l.b16 %v1420
        %v1748 = vunpack.c.l.b16 %v1421
        %v1749 = vunpack.c.l.b16 %v1422
        %v1750 = vunpack.c.l.b16 %v1423
        %v1751 = vunpack.c.l.b16 %v1424
        %v1752 = vunpack.c.l.b16 %v1425
        %v1753 = vunpack.c.l.b16 %v1426
        %v1754 = vunpack.c.l.b16 %v1427
        %v1755 = vunpack.c.l.b16 %v1428
        %v1756 = vunpack.c.l.b16 %v1429
        %v1757 = vunpack.c.l.b16 %v1430
        %v1758 = vunpack.c.l.b16 %v1431
        %v1759 = vunpack.c.l.b16 %v1432
        %v1760 = vunpack.c.l.b16 %v1433
        %v1761 = vunpack.c.l.b16 %v1434
        %v1762 = vunpack.c.l.b16 %v1435
        %v1763 = vunpack.c.l.b16 %v1436
        %v1764 = vunpack.c.l.b16 %v1437
        %v1765 = vunpack.c.l.b16 %v1438
        %v1766 = vunpack.c.l.b16 %v1439
        %v1767 = vunpack.c.l.b16 %v1440
        %v1768 = vunpack.c.l.b16 %v1441
        %v1769 = vunpack.c.l.b16 %v1442
        %v1770 = vunpack.c.l.b16 %v1443
        %v1771 = vunpack.c.l.b16 %v1444
        %v1772 = vunpack.c.l.b16 %v1445
        %v1773 = vunpack.c.l.b16 %v1446
        %v1774 = vunpack.c.l.b16 %v1447
        %v1775 = vunpack.c.l.b16 %v1448
        %v1776 = vunpack.c.l.b16 %v1449
        %v1777 = vunpack.c.l.b16 %v1450
        %v1778 = vunpack.c.l.b16 %v1451
        %v1779 = vunpack.c.l.b16 %v1452
        %v1780 = vunpack.c.l.b16 %v1453
        %v1781 = vunpack.c.l.b16 %v1454
        %v1782 = vunpack.c.l.b16 %v1455
        %v1783 = vunpack.c.l.b16 %v1456
        %v1784 = vunpack.c.l.b16 %v1457
        %v1785 = vunpack.c.l.b16 %v1458
        %v1786 = vunpack.c.l.b16 %v1459
        %v1787 = vunpack.c.l.b16 %v1460
        %v1788 = vunpack.c.l.b16 %v1461
        %v1789 = vunpack.c.l.b16 %v1462
        %v1790 = vunpack.c.l.b16 %v1463
        %v1791 = vunpack.c.l.b16 %v1464
        %v1792 = vunpack.c.l.b16 %v1465
        %v1793 = vunpack.c.l.b16 %v1466
        %v1794 = vunpack.c.l.b16 %v1467
        %v1795 = vunpack.c.l.b16 %v1468
        %v1796 = vunpack.c.l.b16 %v1469
        %v1797 = vunpack.c.l.b16 %v1470
        %v1798 = vunpack.c.l.b16 %v1471
        %v1799 = vunpack.c.l.b16 %v1472
        %v1800 = vunpack.c.l.b16 %v1473
        %v1801 = vunpack.c.l.b16 %v1474
        %v1802 = vunpack.c.l.b16 %v1475
        %v1803 = vunpack.c.l.b16 %v1476
        %v1804 = vunpack.c.l.b16 %v1477
        %v1805 = vunpack.c.l.b16 %v1478
        %v1806 = vunpack.c.l.b16 %v1479
        %v1807 = vunpack.c.l.b16 %v1480
        %v1808 = vunpack.c.l.b16 %v1481
        %v1809 = vunpack.c.l.b16 %v1482
        %v1810 = vunpack.c.l.b16 %v1483
        %v1811 = vunpack.c.l.b16 %v1484
        %v1812 = vunpack.c.l.b16 %v1485
        %v1813 = vunpack.c.l.b16 %v1486
        %v1814 = vunpack.c.l.b16 %v1487
        %v1815 = vunpack.c.l.b16 %v1488
        %v1816 = vunpack.c.l.b16 %v1489
        %v1817 = vunpack.c.l.b16 %v1490
        %v1818 = vunpack.c.l.b16 %v1491
        %v1819 = vunpack.c.l.b16 %v1492
        %v1820 = vunpack.c.l.b16 %v1493
        %v1821 = vunpack.c.l.b16 %v1494
        %v1822 = vunpack.c.l.b16 %v1495
        %v1823 = vunpack.c.l.b16 %v1496
        %v1824 = vunpack.c.l.b16 %v1497
        %v1825 = vunpack.c.l.b16 %v1498
        %v1826 = vpack.c.b16 %v1699, %v1698
        %v1827 = vpack.c.b16 %v1701, %v1700
        %v1828 = vpack.c.b16 %v1703, %v1702
        %v1829 = vpack.c.b16 %v1705, %v1704
        %v1830 = vpack.c.b16 %v1707, %v1706
        %v1831 = vpack.c.b16 %v1709, %v1708
        %v1832 = vpack.c.b16 %v1711, %v1710
        %v1833 = vpack.c.b16 %v1713, %v1712
        %v1834 = vpack.c.b16 %v1715, %v1714
        %v1835 = vpack.c.b16 %v1717, %v1716
        %v1836 = vpack.c.b16 %v1719, %v1718
        %v1837 = vpack.c.b16 %v1721, %v1720
        %v1838 = vpack.c.b16 %v1723, %v1722
        %v1839 = vpack.c.b16 %v1725, %v1724
        %v1840 = vpack.c.b16 %v1727, %v1726
        %v1841 = vpack.c.b16 %v1729, %v1728
        %v1842 = vpack.c.b16 %v1731, %v1730
        %v1843 = vpack.c.b16 %v1733, %v1732
        %v1844 = vpack.c.b16 %v1735, %v1734
        %v1845 = vpack.c.b16 %v1737, %v1736
        %v1846 = vpack.c.b16 %v1739, %v1738
        %v1847 = vpack.c.b16 %v1741, %v1740
        %v1848 = vpack.c.b16 %v1743, %v1742
        %v1849 = vpack.c.b16 %v1745, %v1744
        %v1850 = vpack.c.b16 %v1747, %v1746
        %v1851 = vpack.c.b16 %v1749, %v1748
        %v1852 = vpack.c.b16 %v1751, %v1750
        %v1853 = vpack.c.b16 %v1753, %v1752
        %v1854 = vpack.c.b16 %v1755, %v1754
        %v1855 = vpack.c.b16 %v1757, %v1756
        %v1856 = vpack.c.b16 %v1759, %v1758
        %v1857 = vpack.c.b16 %v1761, %v1760
        %v1858 = vpack.c.b16 %v1763, %v1762
        %v1859 = vpack.c.b16 %v1765, %v1764
        %v1860 = vpack.c.b16 %v1767, %v1766
        %v1861 = vpack.c.b16 %v1769, %v1768
        %v1862 = vpack.c.b16 %v1771, %v1770
        %v1863 = vpack.c.b16 %v1773, %v1772
        %v1864 = vpack.c.b16 %v1775, %v1774
        %v1865 = vpack.c.b16 %v1777, %v1776
        %v1866 = vpack.c.b16 %v1779, %v1778
        %v1867 = vpack.c.b16 %v1781, %v1780
        %v1868 = vpack.c.b16 %v1783, %v1782
        %v1869 = vpack.c.b16 %v1785, %v1784
        %v1870 = vpack.c.b16 %v1787, %v1786
        %v1871 = vpack.c.b16 %v1789, %v1788
        %v1872 = vpack.c.b16 %v1791, %v1790
        %v1873 = vpack.c.b16 %v1793, %v1792
        %v1874 = vpack.c.b16 %v1795, %v1794
        %v1875 = vpack.c.b16 %v1797, %v1796
        %v1876 = vpack.c.b16 %v1799, %v1798
        %v1877 = vpack.c.b16 %v1801, %v1800
        %v1878 = vpack.c.b16 %v1803, %v1802
        %v1879 = vpack.c.b16 %v1805, %v1804
        %v1880 = vpack.c.b16 %v1807, %v1806
        %v1881 = vpack.c.b16 %v1809, %v1808
        %v1882 = vpack.c.b16 %v1811, %v1810
        %v1883 = vpack.c.b16 %v1813, %v1812
        %v1884 = vpack.c.b16 %v1815, %v1814
        %v1885 = vpack.c.b16 %v1817, %v1816
        %v1886 = vpack.c.b16 %v1819, %v1818
        %v1887 = vpack.c.b16 %v1821, %v1820
        %v1888 = vpack.c.b16 %v1823, %v1822
        %v1889 = vpack.c.b16 %v1825, %v1824
        %1954 = vmatprep.subr.bf16.mxu0 0
        %1955 = vmatpush1.bf16.msra.mxu0 %v1833
        %1956 = vmatprep.subr.bf16.mxu0 0
        %1957 = vmatpush1.bf16.msra.mxu0 %v1832
        %1958 = vmatprep.subr.bf16.mxu0 0
        %1959 = vmatpush1.bf16.msra.mxu0 %v1831
        %1960 = vmatprep.subr.bf16.mxu0 0
        %1961 = vmatpush1.bf16.msra.mxu0 %v1830
        %1962 = vmatprep.subr.bf16.mxu0 0
        %1963 = vmatpush1.bf16.msra.mxu0 %v1829
        %1964 = vmatprep.subr.bf16.mxu0 0
        %1965 = vmatpush1.bf16.msra.mxu0 %v1828
        %1966 = vmatprep.subr.bf16.mxu0 0
        %1967 = vmatpush1.bf16.msra.mxu0 %v1827
        %1968 = vmatprep.subr.bf16.mxu0 0
        %1969 = vmatpush1.bf16.msra.mxu0 %v1826
        %1970 = vmatprep.subr.bf16.mxu0 0
        %1971 = vmatpush2.bf16.msra.mxu0 %v1841
        %1972 = vmatprep.subr.bf16.mxu0 0
        %1973 = vmatpush2.bf16.msra.mxu0 %v1840
        %1974 = vmatprep.subr.bf16.mxu0 0
        %1975 = vmatpush2.bf16.msra.mxu0 %v1839
        %1976 = vmatprep.subr.bf16.mxu0 0
        %1977 = vmatpush2.bf16.msra.mxu0 %v1838
        %1978 = vmatprep.subr.bf16.mxu0 0
        %1979 = vmatpush2.bf16.msra.mxu0 %v1837
        %1980 = vmatprep.subr.bf16.mxu0 0
        %1981 = vmatpush2.bf16.msra.mxu0 %v1836
        %1982 = vmatprep.subr.bf16.mxu0 0
        %1983 = vmatpush2.bf16.msra.mxu0 %v1835
        %1984 = vmatprep.subr.bf16.mxu0 0
        %1985 = vmatpush2.bf16.msra.mxu0 %v1834
        %1986 = vmatprep.mubr.bf16.mxu0 %v1507
        %1987 = vmatmul.mubr.bf16.gmra.mxu0 %v1506
        %v1988 = vpop.f32.mrf.mxu0
        %v1989 = vadd.f32 %v1504, %v1988
        %v1990 = vpop.f32.mrf.mxu0
        %v1991 = vpop.f32.mrf.mxu0
        %v1992 = vadd.f32 %v1504, %v1991
        %v1993 = vpop.f32.mrf.mxu0
        %1994 = vmatprep.mubr.bf16.mxu0 %v1515
        %1995 = vmatmul.mubr.bf16.gmra.mxu0 %v1514
        %v1996 = vpop.f32.mrf.mxu0
        %v1997 = vadd.f32 %v1504, %v1996
        %v1998 = vpop.f32.mrf.mxu0
        %v1999 = vpop.f32.mrf.mxu0
        %v2000 = vadd.f32 %v1504, %v1999
        %v2001 = vpop.f32.mrf.mxu0
        %2002 = vmatprep.mubr.bf16.mxu0 %v1523
        %2003 = vmatmul.mubr.bf16.gmra.mxu0 %v1522
        %v2004 = vpop.f32.mrf.mxu0
        %v2005 = vadd.f32 %v1504, %v2004
        %v2006 = vpop.f32.mrf.mxu0
        %v2007 = vpop.f32.mrf.mxu0
        %v2008 = vadd.f32 %v1504, %v2007
        %v2009 = vpop.f32.mrf.mxu0
        %2010 = vmatprep.mubr.bf16.mxu0 %v1531
        %2011 = vmatmul.mubr.bf16.gmra.mxu0 %v1530
        %v2012 = vpop.f32.mrf.mxu0
        %v2013 = vadd.f32 %v1504, %v2012
        %v2014 = vpop.f32.mrf.mxu0
        %v2015 = vpop.f32.mrf.mxu0
        %v2016 = vadd.f32 %v1504, %v2015
        %v2017 = vpop.f32.mrf.mxu0
        %2018 = vdwg.mxu0
        %2019 = vmatprep.subr.bf16.mxu0 0
        %2020 = vmatpush1.bf16.msra.mxu0 %v1849
        %2021 = vmatprep.subr.bf16.mxu0 0
        %2022 = vmatpush1.bf16.msra.mxu0 %v1848
        %2023 = vmatprep.subr.bf16.mxu0 0
        %2024 = vmatpush1.bf16.msra.mxu0 %v1847
        %2025 = vmatprep.subr.bf16.mxu0 0
        %2026 = vmatpush1.bf16.msra.mxu0 %v1846
        %2027 = vmatprep.subr.bf16.mxu0 0
        %2028 = vmatpush1.bf16.msra.mxu0 %v1845
        %2029 = vmatprep.subr.bf16.mxu0 0
        %2030 = vmatpush1.bf16.msra.mxu0 %v1844
        %2031 = vmatprep.subr.bf16.mxu0 0
        %2032 = vmatpush1.bf16.msra.mxu0 %v1843
        %2033 = vmatprep.subr.bf16.mxu0 0
        %2034 = vmatpush1.bf16.msra.mxu0 %v1842
        %2035 = vmatprep.subr.bf16.mxu0 0
        %2036 = vmatpush2.bf16.msra.mxu0 %v1857
        %2037 = vmatprep.subr.bf16.mxu0 0
        %2038 = vmatpush2.bf16.msra.mxu0 %v1856
        %2039 = vmatprep.subr.bf16.mxu0 0
        %2040 = vmatpush2.bf16.msra.mxu0 %v1855
        %2041 = vmatprep.subr.bf16.mxu0 0
        %2042 = vmatpush2.bf16.msra.mxu0 %v1854
        %2043 = vmatprep.subr.bf16.mxu0 0
        %2044 = vmatpush2.bf16.msra.mxu0 %v1853
        %2045 = vmatprep.subr.bf16.mxu0 0
        %2046 = vmatpush2.bf16.msra.mxu0 %v1852
        %2047 = vmatprep.subr.bf16.mxu0 0
        %2048 = vmatpush2.bf16.msra.mxu0 %v1851
        %2049 = vmatprep.subr.bf16.mxu0 0
        %2050 = vmatpush2.bf16.msra.mxu0 %v1850
        %2051 = vmatprep.mubr.bf16.mxu0 %v1509
        %2052 = vmatmul.mubr.bf16.gmra.mxu0 %v1508
        %v2053 = vpop.f32.mrf.mxu0
        %v2054 = vadd.f32 %v1989, %v2053
        %v2055 = vpop.f32.mrf.mxu0
        %v2056 = vpop.f32.mrf.mxu0
        %v2057 = vadd.f32 %v1992, %v2056
        %v2058 = vpop.f32.mrf.mxu0
        %2059 = vmatprep.mubr.bf16.mxu0 %v1517
        %2060 = vmatmul.mubr.bf16.gmra.mxu0 %v1516
        %v2061 = vpop.f32.mrf.mxu0
        %v2062 = vadd.f32 %v1997, %v2061
        %v2063 = vpop.f32.mrf.mxu0
        %v2064 = vpop.f32.mrf.mxu0
        %v2065 = vadd.f32 %v2000, %v2064
        %v2066 = vpop.f32.mrf.mxu0
        %2067 = vmatprep.mubr.bf16.mxu0 %v1525
        %2068 = vmatmul.mubr.bf16.gmra.mxu0 %v1524
        %v2069 = vpop.f32.mrf.mxu0
        %v2070 = vadd.f32 %v2005, %v2069
        %v2071 = vpop.f32.mrf.mxu0
        %v2072 = vpop.f32.mrf.mxu0
        %v2073 = vadd.f32 %v2008, %v2072
        %v2074 = vpop.f32.mrf.mxu0
        %2075 = vmatprep.mubr.bf16.mxu0 %v1533
        %2076 = vmatmul.mubr.bf16.gmra.mxu0 %v1532
        %v2077 = vpop.f32.mrf.mxu0
        %v2078 = vadd.f32 %v2013, %v2077
        %v2079 = vpop.f32.mrf.mxu0
        %v2080 = vpop.f32.mrf.mxu0
        %v2081 = vadd.f32 %v2016, %v2080
        %v2082 = vpop.f32.mrf.mxu0
        %2083 = vdwg.mxu0
        %2084 = vmatprep.subr.bf16.mxu0 0
        %2085 = vmatpush1.bf16.msra.mxu0 %v1865
        %2086 = vmatprep.subr.bf16.mxu0 0
        %2087 = vmatpush1.bf16.msra.mxu0 %v1864
        %2088 = vmatprep.subr.bf16.mxu0 0
        %2089 = vmatpush1.bf16.msra.mxu0 %v1863
        %2090 = vmatprep.subr.bf16.mxu0 0
        %2091 = vmatpush1.bf16.msra.mxu0 %v1862
        %2092 = vmatprep.subr.bf16.mxu0 0
        %2093 = vmatpush1.bf16.msra.mxu0 %v1861
        %2094 = vmatprep.subr.bf16.mxu0 0
        %2095 = vmatpush1.bf16.msra.mxu0 %v1860
        %2096 = vmatprep.subr.bf16.mxu0 0
        %2097 = vmatpush1.bf16.msra.mxu0 %v1859
        %2098 = vmatprep.subr.bf16.mxu0 0
        %2099 = vmatpush1.bf16.msra.mxu0 %v1858
        %2100 = vmatprep.subr.bf16.mxu0 0
        %2101 = vmatpush2.bf16.msra.mxu0 %v1873
        %2102 = vmatprep.subr.bf16.mxu0 0
        %2103 = vmatpush2.bf16.msra.mxu0 %v1872
        %2104 = vmatprep.subr.bf16.mxu0 0
        %2105 = vmatpush2.bf16.msra.mxu0 %v1871
        %2106 = vmatprep.subr.bf16.mxu0 0
        %2107 = vmatpush2.bf16.msra.mxu0 %v1870
        %2108 = vmatprep.subr.bf16.mxu0 0
        %2109 = vmatpush2.bf16.msra.mxu0 %v1869
        %2110 = vmatprep.subr.bf16.mxu0 0
        %2111 = vmatpush2.bf16.msra.mxu0 %v1868
        %2112 = vmatprep.subr.bf16.mxu0 0
        %2113 = vmatpush2.bf16.msra.mxu0 %v1867
        %2114 = vmatprep.subr.bf16.mxu0 0
        %2115 = vmatpush2.bf16.msra.mxu0 %v1866
        %2116 = vmatprep.mubr.bf16.mxu0 %v1511
        %2117 = vmatmul.mubr.bf16.gmra.mxu0 %v1510
        %v2118 = vpop.f32.mrf.mxu0
        %v2119 = vadd.f32 %v2054, %v2118
        %v2120 = vpop.f32.mrf.mxu0
        %v2121 = vpop.f32.mrf.mxu0
        %v2122 = vadd.f32 %v2057, %v2121
        %v2123 = vpop.f32.mrf.mxu0
        %2124 = vmatprep.mubr.bf16.mxu0 %v1519
        %2125 = vmatmul.mubr.bf16.gmra.mxu0 %v1518
        %v2126 = vpop.f32.mrf.mxu0
        %v2127 = vadd.f32 %v2062, %v2126
        %v2128 = vpop.f32.mrf.mxu0
        %v2129 = vpop.f32.mrf.mxu0
        %v2130 = vadd.f32 %v2065, %v2129
        %v2131 = vpop.f32.mrf.mxu0
        %2132 = vmatprep.mubr.bf16.mxu0 %v1527
        %2133 = vmatmul.mubr.bf16.gmra.mxu0 %v1526
        %v2134 = vpop.f32.mrf.mxu0
        %v2135 = vadd.f32 %v2070, %v2134
        %v2136 = vpop.f32.mrf.mxu0
        %v2137 = vpop.f32.mrf.mxu0
        %v2138 = vadd.f32 %v2073, %v2137
        %v2139 = vpop.f32.mrf.mxu0
        %2140 = vmatprep.mubr.bf16.mxu0 %v1535
        %2141 = vmatmul.mubr.bf16.gmra.mxu0 %v1534
        %v2142 = vpop.f32.mrf.mxu0
        %v2143 = vadd.f32 %v2078, %v2142
        %v2144 = vpop.f32.mrf.mxu0
        %v2145 = vpop.f32.mrf.mxu0
        %v2146 = vadd.f32 %v2081, %v2145
        %v2147 = vpop.f32.mrf.mxu0
        %2148 = vdwg.mxu0
        %2149 = vmatprep.subr.bf16.mxu0 0
        %2150 = vmatpush1.bf16.msra.mxu0 %v1881
        %2151 = vmatprep.subr.bf16.mxu0 0
        %2152 = vmatpush1.bf16.msra.mxu0 %v1880
        %2153 = vmatprep.subr.bf16.mxu0 0
        %2154 = vmatpush1.bf16.msra.mxu0 %v1879
        %2155 = vmatprep.subr.bf16.mxu0 0
        %2156 = vmatpush1.bf16.msra.mxu0 %v1878
        %2157 = vmatprep.subr.bf16.mxu0 0
        %2158 = vmatpush1.bf16.msra.mxu0 %v1877
        %2159 = vmatprep.subr.bf16.mxu0 0
        %2160 = vmatpush1.bf16.msra.mxu0 %v1876
        %2161 = vmatprep.subr.bf16.mxu0 0
        %2162 = vmatpush1.bf16.msra.mxu0 %v1875
        %2163 = vmatprep.subr.bf16.mxu0 0
        %2164 = vmatpush1.bf16.msra.mxu0 %v1874
        %2165 = vmatprep.subr.bf16.mxu0 0
        %2166 = vmatpush2.bf16.msra.mxu0 %v1889
        %2167 = vmatprep.subr.bf16.mxu0 0
        %2168 = vmatpush2.bf16.msra.mxu0 %v1888
        %2169 = vmatprep.subr.bf16.mxu0 0
        %2170 = vmatpush2.bf16.msra.mxu0 %v1887
        %2171 = vmatprep.subr.bf16.mxu0 0
        %2172 = vmatpush2.bf16.msra.mxu0 %v1886
        %2173 = vmatprep.subr.bf16.mxu0 0
        %2174 = vmatpush2.bf16.msra.mxu0 %v1885
        %2175 = vmatprep.subr.bf16.mxu0 0
        %2176 = vmatpush2.bf16.msra.mxu0 %v1884
        %2177 = vmatprep.subr.bf16.mxu0 0
        %2178 = vmatpush2.bf16.msra.mxu0 %v1883
        %2179 = vmatprep.subr.bf16.mxu0 0
        %2180 = vmatpush2.bf16.msra.mxu0 %v1882
        %2181 = vmatprep.mubr.bf16.mxu0 %v1513
        %2182 = vmatmul.mubr.bf16.gmra.mxu0 %v1512
        %v2183 = vpop.f32.mrf.mxu0
        %v2184 = vadd.f32 %v2119, %v2183
        %v2185 = vpop.f32.mrf.mxu0
        %v2186 = vpop.f32.mrf.mxu0
        %v2187 = vadd.f32 %v2122, %v2186
        %v2188 = vpop.f32.mrf.mxu0
        %2189 = vmatprep.mubr.bf16.mxu0 %v1521
        %2190 = vmatmul.mubr.bf16.gmra.mxu0 %v1520
        %v2191 = vpop.f32.mrf.mxu0
        %v2192 = vadd.f32 %v2127, %v2191
        %v2193 = vpop.f32.mrf.mxu0
        %v2194 = vpop.f32.mrf.mxu0
        %v2195 = vadd.f32 %v2130, %v2194
        %v2196 = vpop.f32.mrf.mxu0
        %2197 = vmatprep.mubr.bf16.mxu0 %v1529
        %2198 = vmatmul.mubr.bf16.gmra.mxu0 %v1528
        %v2199 = vpop.f32.mrf.mxu0
        %v2200 = vadd.f32 %v2135, %v2199
        %v2201 = vpop.f32.mrf.mxu0
        %v2202 = vpop.f32.mrf.mxu0
        %v2203 = vadd.f32 %v2138, %v2202
        %v2204 = vpop.f32.mrf.mxu0
        %2205 = vmatprep.mubr.bf16.mxu0 %v1537
        %2206 = vmatmul.mubr.bf16.gmra.mxu0 %v1536
        %v2207 = vpop.f32.mrf.mxu0
        %v2208 = vadd.f32 %v2143, %v2207
        %v2209 = vpop.f32.mrf.mxu0
        %v2210 = vpop.f32.mrf.mxu0
        %v2211 = vadd.f32 %v2146, %v2210
        %v2212 = vpop.f32.mrf.mxu0
        %2213 = vdwg.mxu0
        %2214 = vst [vmem:[%s271] sm:$0xff] %v2184
        %2215 = vst [vmem:[%s271 + $0x8] sm:$0xff] %v2187
        %2216 = vst [vmem:[%s271 + $0x10] sm:$0xff] %v2192
        %2217 = vst [vmem:[%s271 + $0x18] sm:$0xff] %v2195
        %2218 = vst [vmem:[%s271 + $0x20] sm:$0xff] %v2200
        %2219 = vst [vmem:[%s271 + $0x28] sm:$0xff] %v2203
        %2220 = vst [vmem:[%s271 + $0x30] sm:$0xff] %v2208
        %2221 = vst [vmem:[%s271 + $0x38] sm:$0xff] %v2211
        %s2222 = sand.u32 %s156, 1
        %s2223 = scalar_lea.sflag [#allocation4], %s2222
        %s2224 = sand.u32 %s156, 1
        %s2225 = smul.addr %s2224, 64
        %s2226 = scalar_lea.vmem [#allocation5], %s2225
        // Predicated region
        $region41: #{fwd.1} parent=35 // pred_check
          %p2227 = pneg %p166
        $region42: #{fwd.1} parent=35 // pred_check_branch
          %2229 = sbr.rel (%p2227) target = $region44
        $region43: #{fwd.1} parent=35 // pred_region
          %s2230 = smul.u32 8, %s26
          %s2232 = ssub.s32 1024, 1024
          %2233 = vsyncadd %s2223, %s2232
          %s2234 = sadd.s32 %s25, %s2230
          %s2235 = smul.addr %s24, 8
          %s2236 = sadd.s32 %s2234, %s2235
          %s2237 = smul.addr %s2236, 128
          %s2238 = scalar_lea.hbm %s4, %s2237
          %s2239 = sshll.u32 %s2226, 4
          %s2240 = int_to_ptr.vmem [resolvable:$true] %s2239
          %2245 = dma.vmem_to_hbm [thread:$0]  %s2240, 1024, %s2238, %s2223, 128, 128, 8
        $region44: #{fwd.1} parent=35 // pred_fallthru
          _
      $region36: #{fwd.1} parent=5 // pred_fallthru
        _
      %p2246 = scmp.le.s32.totalorder 2, %s14
      // Predicated region
      $region45: #{fwd.1} parent=5 // pred_check
        %p2247 = pneg %p2246
      $region46: #{fwd.1} parent=5 // pred_check_branch
        %2249 = sbr.rel (%p2247) target = $region48
      $region47: #{fwd.1} parent=5 // pred_region
        %s2250 = ssub.s32 %s14, 2
        // Predicated region
        $region49: #{fwd.1} parent=47 // pred_check
          %p2251 = pneg %p172
        $region50: #{fwd.1} parent=47 // pred_check_branch
          %2253 = sbr.rel (%p2251) target = $region52
        $region51: #{fwd.1} parent=47 // pred_region
          %s2254 = sand.u32 %s157, 1
          %s2255 = scalar_lea.sflag [#allocation4], %s2254
          %s2256 = sand.u32 %s157, 1
          %s2257 = smul.addr %s2256, 64
          %s2258 = scalar_lea.vmem [#allocation5], %s2257
          %2259 = dma.done %s2255, 1024
        $region52: #{fwd.1} parent=47 // pred_fallthru
          _
      $region48: #{fwd.1} parent=5 // pred_fallthru
        _
    $region6: #{fwd.1} parent=1 // loop_footer
      %s18 = sadd.s32 1, %s14
    $region7: #{fwd.1} parent=1 // loop_footer_branch
      %13 = sbr.rel target = $region3
    $region8: #{fwd.1} parent=1 // loop_exit
      _
    %2260 = vsyncpa [#allocation3], 1
    %s2261 = scalar_lea.sflag [#allocation3], 1
    %2262 = vsyncpa %s2261, 1
    %2263 = vsyncpa [#allocation4], 1
    %s2264 = scalar_lea.sflag [#allocation4], 1
    %2265 = vsyncpa %s2264, 1

</llo_original>
